<compile_context>
chip_gen: v6e
topology: v6e:2x2x1
jax: 0.10.0
libtpu: 0.0.40
codegen_flags: <defaults>
</compile_context>

<pallas_src>
import functools

import jax
import jax.numpy as jnp
from jax.experimental import pallas as pl
from jax.experimental.pallas import tpu as pltpu


def _round_up(n, m):
    return ((n + m - 1) // m) * m


def _pick_batch_tile(B, *, max_tile=1024):
    """Large batch tile (amortize per-step overhead), but keep >=2 grid steps
    on the 'parallel' axis for big batches so both v7x TensorCores get work.
    On v5e/v6e the grid is a serial loop, so one big tile is also fine."""
    if B <= 512:
        return B                                  # whole batch in one tile
    tb = min(max_tile, -(-B // 2))                # ceil(B/2), capped
    return min(B, ((tb + 15) // 16) * 16)         # multiple of 16 (bf16 sublanes)


# ---------------------------------------------------------------------------
# Fused kernel: chain of (matmul + bias) over pre-masked, lane-padded weights.
# ---------------------------------------------------------------------------
def _fused_made_kernel(num_layers, x_ref, *refs):
    w_refs = refs[:num_layers]
    b_refs = refs[num_layers:2 * num_layers]
    o_ref = refs[2 * num_layers]

    h = x_ref[...]                                   # (TB, in_dim), native dtype
    for w_ref, b_ref in zip(w_refs, b_refs):
        # bf16 MXU operands (cast in-kernel), f32 accumulate; bias add and the
        # carried h stay f32 (v5e-safe epilogue).
        h = jnp.dot(h.astype(w_ref.dtype), w_ref[...],
                    preferred_element_type=jnp.float32) + b_ref[...]
    o_ref[...] = h.astype(o_ref.dtype)               # lane-dense 128-wide store


def fused_made_layers(x, masked_weights, biases, *, max_block_b=1024,
                      compute_dtype=jnp.bfloat16):
    """Run the whole MADE stack in one pallas_call, tiled over the batch."""
    B, in_dim = x.shape
    num_layers = len(masked_weights)
    out_dim = masked_weights[-1].shape[1]

    # --- lane-dense padding: every layer output width -> multiple of 128 -----
    padded_w, padded_b = [], []
    prev_pad = in_dim                      # layer 0 keeps the native input width
    for w, b in zip(masked_weights, biases):
        d_in, d_out = w.shape
        d_out_pad = _round_up(d_out, 128)
        wp = jnp.zeros((prev_pad, d_out_pad), compute_dtype)
        wp = wp.at[:d_in, :d_out].set(w.astype(compute_dtype))
        bp = jnp.zeros((1, d_out_pad), jnp.float32)
        bp = bp.at[0, :d_out].set(b.astype(jnp.float32))
        padded_w.append(wp)
        padded_b.append(bp)
        prev_pad = d_out_pad
    out_pad = prev_pad

    tb = _pick_batch_tile(B, max_tile=max_block_b)
    grid = (pl.cdiv(B, tb),)

    in_specs = [pl.BlockSpec((tb, in_dim), lambda i: (i, 0))]
    # Weights / biases: block index fixed at (0, 0) -> VMEM-resident across
    # all batch tiles (single DMA each).
    for wp in padded_w:
        d0, d1 = wp.shape
        in_specs.append(pl.BlockSpec((d0, d1), lambda i: (0, 0)))
    for bp in padded_b:
        in_specs.append(pl.BlockSpec((1, bp.shape[-1]), lambda i: (0, 0)))

    flops = 2 * B * sum(wp.shape[0] * wp.shape[1] for wp in padded_w)
    bytes_accessed = (
        x.size * x.dtype.itemsize
        + sum(wp.size * wp.dtype.itemsize for wp in padded_w)
        + sum(bp.size * bp.dtype.itemsize for bp in padded_b)
        + B * out_pad * 4
    )

    out_padded = pl.pallas_call(
        functools.partial(_fused_made_kernel, num_layers),
        out_shape=jax.ShapeDtypeStruct((B, out_pad), jnp.float32),
        grid=grid,
        in_specs=in_specs,
        out_specs=pl.BlockSpec((tb, out_pad), lambda i: (i, 0)),
        compiler_params=pltpu.CompilerParams(
            dimension_semantics=("parallel",)),
        cost_estimate=pl.CostEstimate(flops=flops, transcendentals=0,
                                      bytes_accessed=bytes_accessed),
    )(x, *padded_w, *padded_b)

    # Padded output columns are exact zeros (zero weight cols + zero bias);
    # slicing them off is pure layout plumbing.
    return out_padded[:, :out_dim]


# ---------------------------------------------------------------------------
# Mask construction (plain JAX, fully traceable - no host syncs).
# ---------------------------------------------------------------------------
def sample_max_connections(key, prev_connections, out_dim):
    """ceil(Uniform(min(prev), out_dim)) per output unit, as in construct_mask."""
    lo = jnp.min(prev_connections)
    u = jax.random.uniform(key, (out_dim,), minval=lo,
                           maxval=jnp.float32(out_dim))
    return jnp.ceil(u).astype(jnp.float32)


def build_masked_weights(weights, prev_connections, mask_keys):
    """Per layer: sample max_connections, build mask, return W*mask list."""
    prev = prev_connections
    masked = []
    for w, key in zip(weights, mask_keys):
        out_dim = w.shape[1]
        maxc = sample_max_connections(key, prev, out_dim)
        mask = (maxc[None, :] >= prev[:, None]).astype(w.dtype)  # last_layer=False
        masked.append(w * mask)
        prev = maxc
    return masked, prev


def deep_made_forward(x, weights, biases, prev_connections, mask_keys,
                      *, max_block_b=1024, compute_dtype=jnp.bfloat16):
    """Full DeepMADE forward: sample masks (JAX) + fused masked-matmul chain (Pallas)."""
    masked_weights, _ = build_masked_weights(weights, prev_connections, mask_keys)
    return fused_made_layers(x, masked_weights, biases,
                             max_block_b=max_block_b, compute_dtype=compute_dtype)


def deep_made_reference(x, weights, biases, prev_connections, mask_keys,
                        compute_dtype=jnp.bfloat16):
    """Plain-JAX reference using the identical dtype path for a tight comparison."""
    masked_weights, _ = build_masked_weights(weights, prev_connections, mask_keys)
    h = x
    for w, b in zip(masked_weights, biases):
        h = jnp.dot(h.astype(compute_dtype), w.astype(compute_dtype),
                    preferred_element_type=jnp.float32) + b.astype(jnp.float32)
    return h


if __name__ == "__main__":
    # MADE-consistent shapes: 3 layers, 16 -> 32 -> 32 -> 16.
    in_dims = [16, 32, 32]
    out_dims = [32, 32, 16]
    batch = 1024           # -> tile 512, two "parallel" grid steps
    n_layers = len(in_dims)

    root = jax.random.PRNGKey(0)
    keys = jax.random.split(root, 1 + 2 * n_layers + n_layers)
    k_x = keys[0]

    weights, biases = [], []
    ki = 1
    for d_in, d_out in zip(in_dims, out_dims):
        weights.append(jax.random.normal(keys[ki], (d_in, d_out), jnp.float32)); ki += 1
        biases.append(jax.random.normal(keys[ki], (d_out,), jnp.float32)); ki += 1
    mask_keys = [keys[ki + l] for l in range(n_layers)]

    x = jax.random.normal(k_x, (batch, in_dims[0]), jnp.float32)
    # Initial connection degrees 1..in_dim (standard MADE input degrees).
    prev_connections = jnp.arange(1, in_dims[0] + 1, dtype=jnp.float32)

    fwd = jax.jit(functools.partial(deep_made_forward, max_block_b=1024))
    out = jax.block_until_ready(fwd(x, weights, biases, prev_connections, mask_keys))

    ref = deep_made_reference(x, weights, biases, prev_connections, mask_keys)
    assert out.shape == (batch, out_dims[-1])
    assert jnp.allclose(out, ref, atol=1e-2, rtol=1e-2), \
        float(jnp.max(jnp.abs(out - ref)))

    print("KERNEL_OK")
</pallas_src>

<mosaic_0001>
module attributes {stable_mosaic.version = 11 : i64} {
  func.func @_fused_made_kernel(%arg0: i32, %arg1: memref<512x16xf32, #tpu.memory_space<vmem>>, %arg2: memref<16x128xbf16, #tpu.memory_space<vmem>>, %arg3: memref<128x128xbf16, #tpu.memory_space<vmem>>, %arg4: memref<128x128xbf16, #tpu.memory_space<vmem>>, %arg5: memref<1x128xf32, #tpu.memory_space<vmem>>, %arg6: memref<1x128xf32, #tpu.memory_space<vmem>>, %arg7: memref<1x128xf32, #tpu.memory_space<vmem>>, %arg8: memref<512x128xf32, #tpu.memory_space<vmem>>) attributes {dimension_semantics = [#tpu.dimension_semantics<parallel>], iteration_bounds = array<i64: 2>, scalar_prefetch = 0 : i64, scratch_operands = 0 : i64, tpu.core_type = #tpu.core_type<tc>, window_params = [{transform_indices = @transform_0, window_bounds = array<i64: 512, 16>}, {pipeline_mode = #tpu.pipeline_mode<synchronous>, transform_indices = @transform_1, window_bounds = array<i64: 16, 128>}, {pipeline_mode = #tpu.pipeline_mode<synchronous>, transform_indices = @transform_2, window_bounds = array<i64: 128, 128>}, {pipeline_mode = #tpu.pipeline_mode<synchronous>, transform_indices = @transform_3, window_bounds = array<i64: 128, 128>}, {pipeline_mode = #tpu.pipeline_mode<synchronous>, transform_indices = @transform_4, window_bounds = array<i64: 1, 128>}, {pipeline_mode = #tpu.pipeline_mode<synchronous>, transform_indices = @transform_5, window_bounds = array<i64: 1, 128>}, {pipeline_mode = #tpu.pipeline_mode<synchronous>, transform_indices = @transform_6, window_bounds = array<i64: 1, 128>}, {transform_indices = @transform_7, window_bounds = array<i64: 512, 128>}]} {
    %c0 = arith.constant 0 : index
    %c0_0 = arith.constant 0 : index
    %0 = vector.load %arg1[%c0, %c0_0] : memref<512x16xf32, #tpu.memory_space<vmem>>, vector<512x16xf32>
    %1 = arith.truncf %0 : vector<512x16xf32> to vector<512x16xbf16>
    %c0_1 = arith.constant 0 : index
    %c0_2 = arith.constant 0 : index
    %2 = vector.load %arg2[%c0_1, %c0_2] : memref<16x128xbf16, #tpu.memory_space<vmem>>, vector<16x128xbf16>
    %cst = arith.constant dense<0.000000e+00> : vector<512x128xf32>
    %3 = tpu.matmul %1, %2, %cst {dimension_numbers = #tpu.dot_dimension_numbers<[1], [0], [0], [1], [0, 0, 1, 1], [], []>} : vector<512x16xbf16>, vector<16x128xbf16>, vector<512x128xf32> -> vector<512x128xf32>
    %c0_3 = arith.constant 0 : index
    %c0_4 = arith.constant 0 : index
    %4 = vector.load %arg5[%c0_3, %c0_4] : memref<1x128xf32, #tpu.memory_space<vmem>>, vector<1x128xf32>
    %5 = vector.broadcast %4 : vector<1x128xf32> to vector<512x128xf32>
    %6 = arith.addf %3, %5 : vector<512x128xf32>
    %7 = arith.truncf %6 : vector<512x128xf32> to vector<512x128xbf16>
    %c0_5 = arith.constant 0 : index
    %c0_6 = arith.constant 0 : index
    %8 = vector.load %arg3[%c0_5, %c0_6] : memref<128x128xbf16, #tpu.memory_space<vmem>>, vector<128x128xbf16>
    %cst_7 = arith.constant dense<0.000000e+00> : vector<512x128xf32>
    %9 = tpu.matmul %7, %8, %cst_7 {dimension_numbers = #tpu.dot_dimension_numbers<[1], [0], [0], [1], [0, 0, 1, 1], [], []>} : vector<512x128xbf16>, vector<128x128xbf16>, vector<512x128xf32> -> vector<512x128xf32>
    %c0_8 = arith.constant 0 : index
    %c0_9 = arith.constant 0 : index
    %10 = vector.load %arg6[%c0_8, %c0_9] : memref<1x128xf32, #tpu.memory_space<vmem>>, vector<1x128xf32>
    %11 = vector.broadcast %10 : vector<1x128xf32> to vector<512x128xf32>
    %12 = arith.addf %9, %11 : vector<512x128xf32>
    %13 = arith.truncf %12 : vector<512x128xf32> to vector<512x128xbf16>
    %c0_10 = arith.constant 0 : index
    %c0_11 = arith.constant 0 : index
    %14 = vector.load %arg4[%c0_10, %c0_11] : memref<128x128xbf16, #tpu.memory_space<vmem>>, vector<128x128xbf16>
    %cst_12 = arith.constant dense<0.000000e+00> : vector<512x128xf32>
    %15 = tpu.matmul %13, %14, %cst_12 {dimension_numbers = #tpu.dot_dimension_numbers<[1], [0], [0], [1], [0, 0, 1, 1], [], []>} : vector<512x128xbf16>, vector<128x128xbf16>, vector<512x128xf32> -> vector<512x128xf32>
    %c0_13 = arith.constant 0 : index
    %c0_14 = arith.constant 0 : index
    %16 = vector.load %arg7[%c0_13, %c0_14] : memref<1x128xf32, #tpu.memory_space<vmem>>, vector<1x128xf32>
    %17 = vector.broadcast %16 : vector<1x128xf32> to vector<512x128xf32>
    %18 = arith.addf %15, %17 : vector<512x128xf32>
    %c0_15 = arith.constant 0 : index
    %c0_16 = arith.constant 0 : index
    %19 = vector.load %arg8[%c0_15, %c0_16] : memref<512x128xf32, #tpu.memory_space<vmem>>, vector<512x128xf32>
    tpu.vector_store %arg8[%c0_15, %c0_16], %18 {strides = array<i32>} : memref<512x128xf32, #tpu.memory_space<vmem>>, vector<512x128xf32>,
    return
  }
  func.func @transform_0(%arg0: i32) -> (i32, i32) {
    %c0_i32 = arith.constant 0 : i32
    %c0_i32_0 = arith.constant 0 : i32
    return %arg0, %c0_i32 : i32, i32
  }
  func.func @transform_1(%arg0: i32) -> (i32, i32) {
    %c0_i32 = arith.constant 0 : i32
    %c0_i32_0 = arith.constant 0 : i32
    %c0_i32_1 = arith.constant 0 : i32
    return %c0_i32, %c0_i32_0 : i32, i32
  }
  func.func @transform_2(%arg0: i32) -> (i32, i32) {
    %c0_i32 = arith.constant 0 : i32
    %c0_i32_0 = arith.constant 0 : i32
    %c0_i32_1 = arith.constant 0 : i32
    return %c0_i32, %c0_i32_0 : i32, i32
  }
  func.func @transform_3(%arg0: i32) -> (i32, i32) {
    %c0_i32 = arith.constant 0 : i32
    %c0_i32_0 = arith.constant 0 : i32
    %c0_i32_1 = arith.constant 0 : i32
    return %c0_i32, %c0_i32_0 : i32, i32
  }
  func.func @transform_4(%arg0: i32) -> (i32, i32) {
    %c0_i32 = arith.constant 0 : i32
    %c0_i32_0 = arith.constant 0 : i32
    %c0_i32_1 = arith.constant 0 : i32
    return %c0_i32, %c0_i32_0 : i32, i32
  }
  func.func @transform_5(%arg0: i32) -> (i32, i32) {
    %c0_i32 = arith.constant 0 : i32
    %c0_i32_0 = arith.constant 0 : i32
    %c0_i32_1 = arith.constant 0 : i32
    return %c0_i32, %c0_i32_0 : i32, i32
  }
  func.func @transform_6(%arg0: i32) -> (i32, i32) {
    %c0_i32 = arith.constant 0 : i32
    %c0_i32_0 = arith.constant 0 : i32
    %c0_i32_1 = arith.constant 0 : i32
    return %c0_i32, %c0_i32_0 : i32, i32
  }
  func.func @transform_7(%arg0: i32) -> (i32, i32) {
    %c0_i32 = arith.constant 0 : i32
    %c0_i32_0 = arith.constant 0 : i32
    return %arg0, %c0_i32 : i32, i32
  }
}

</mosaic_0001>

<llo_original>
// kernel: deep_made_forward.1
$region0: #{deep_made_forward.1}
  #allocation0 [shape = 'u32[]', space=smem, size = 0x4, offset = 0x4, fixed_abs, tag = 'smem constant byte address 0x4 - core index']
  #allocation1 [shape = 'u32[144,128]{1,0:T(1,128)}', space=vmem, size = 0x12000, scoped, tag = 'internal scratch']
  %s0 = inlined_call_operand.vmem [shape: f32[1024,16], index: 0, kind: input, shape index: {}]
  %s1 = inlined_call_operand.vmem [shape: bf16[16,128], index: 1, kind: input, shape index: {}]
  %s2 = inlined_call_operand.vmem [shape: bf16[128,128], index: 2, kind: input, shape index: {}]
  %s3 = inlined_call_operand.vmem [shape: bf16[128,128], index: 3, kind: input, shape index: {}]
  %s4 = inlined_call_operand.vmem [shape: f32[1,128], index: 4, kind: input, shape index: {}]
  %s5 = inlined_call_operand.vmem [shape: f32[1,128], index: 5, kind: input, shape index: {}]
  %s6 = inlined_call_operand.vmem [shape: f32[1,128], index: 6, kind: input, shape index: {}]
  %s7 = inlined_call_operand.vmem [shape: f32[1024,128], index: 7, kind: output, shape index: {}]
  %s8 = sld [smem:[#allocation0]]
  $region61: #{deep_made_forward.1} parent=0
    _
  %s10 = ssub.s32 1, %s8
  %s11 = scalar_select 0, %s10, %s8
  loop: start=0, step=1, limit=4
  $region2: #{deep_made_forward.1} parent=0 // loop_pre_header
    _
  $region3: #{deep_made_forward.1} parent=0 // loop_header
    %s13 = sphi 0, %s17
    %p14 = scmp.ge.s32.totalorder %s13, 4
    %s23 = sphi 0, %s25
    %s26 = sphi 0, %s23
    %s27 = sphi 0, %s26
    %s43 = sphi 0, %s27
    %s47 = sphi 0, %s47
    %s49 = sphi 0, %s47
    %s50 = sphi 0, %s49
    %s64 = sphi 0, %s50
    %s68 = sphi 0, %s68
    %s70 = sphi 0, %s68
    %s71 = sphi 0, %s70
    %s85 = sphi 0, %s71
    %s89 = sphi 0, %s89
    %s91 = sphi 0, %s89
    %s92 = sphi 0, %s91
    %s106 = sphi 0, %s92
    %s110 = sphi 0, %s110
    %s112 = sphi 0, %s110
    %s113 = sphi 0, %s112
    %s127 = sphi 0, %s113
    %s131 = sphi 0, %s131
    %s133 = sphi 0, %s131
    %s134 = sphi 0, %s133
    %s148 = sphi 0, %s134
    %s152 = sphi 0, %s152
    %s154 = sphi 0, %s152
    %s155 = sphi 0, %s154
    %s169 = sphi 0, %s155
    %s175 = sphi 0, %s177
    %s178 = sphi 0, %s175
    %s179 = sphi 0, %s178
    %s195 = sphi 0, %s179
  $region4: #{deep_made_forward.1} parent=0 // loop_header_branch
    %16 = sbr.rel (%p14) target = $region8
  $region5: #{deep_made_forward.1} parent=0 // loop_body
    %s18 = ssub.s32 %s13, 1
    %s19 = ssub.s32 %s13, 2
    %s20 = sadd.s32 %s13, 1
    %s21 = ssub.s32 %s13, %s20
    %p22 = scmp.eq.s32.totalorder %s21, 0
    %s24 = sadd.s32 %s23, 1
    %s25 = scalar_select %p22, %s23, %s24
    %p28 = pneg %p22
    %p29 = scmp.eq.s32.totalorder %s13, 1
    %p30 = por %p28, %p29
    %p31 = scmp.ne.s32.totalorder %s23, %s26
    %p32 = scmp.eq.s32.totalorder %s13, 0
    %p33 = por %p31, %p32
    %p34 = scmp.ne.s32.totalorder %s23, %s26
    %p35 = scmp.eq.s32.totalorder %s18, 1
    %p36 = por %p34, %p35
    %p37 = scmp.ne.s32.totalorder %s26, %s27
    %p38 = scmp.eq.s32.totalorder %s18, 0
    %p39 = por %p37, %p38
    %p40 = scmp.ne.s32.totalorder %s26, %s27
    %p41 = scmp.eq.s32.totalorder %s19, 1
    %p42 = por %p40, %p41
    %p44 = scmp.ne.s32.totalorder %s27, %s43
    %p45 = scmp.eq.s32.totalorder %s19, 0
    %p46 = por %p44, %p45
    %s48 = sadd.s32 %s47, 1
    %p51 = scmp.eq.s32.totalorder %s13, 1
    %p52 = scmp.ne.s32.totalorder %s47, %s49
    %p53 = scmp.eq.s32.totalorder %s13, 0
    %p54 = por %p52, %p53
    %p55 = scmp.ne.s32.totalorder %s47, %s49
    %p56 = scmp.eq.s32.totalorder %s18, 1
    %p57 = por %p55, %p56
    %p58 = scmp.ne.s32.totalorder %s49, %s50
    %p59 = scmp.eq.s32.totalorder %s18, 0
    %p60 = por %p58, %p59
    %p61 = scmp.ne.s32.totalorder %s49, %s50
    %p62 = scmp.eq.s32.totalorder %s19, 1
    %p63 = por %p61, %p62
    %p65 = scmp.ne.s32.totalorder %s50, %s64
    %p66 = scmp.eq.s32.totalorder %s19, 0
    %p67 = por %p65, %p66
    %s69 = sadd.s32 %s68, 1
    %p72 = scmp.eq.s32.totalorder %s13, 1
    %p73 = scmp.ne.s32.totalorder %s68, %s70
    %p74 = scmp.eq.s32.totalorder %s13, 0
    %p75 = por %p73, %p74
    %p76 = scmp.ne.s32.totalorder %s68, %s70
    %p77 = scmp.eq.s32.totalorder %s18, 1
    %p78 = por %p76, %p77
    %p79 = scmp.ne.s32.totalorder %s70, %s71
    %p80 = scmp.eq.s32.totalorder %s18, 0
    %p81 = por %p79, %p80
    %p82 = scmp.ne.s32.totalorder %s70, %s71
    %p83 = scmp.eq.s32.totalorder %s19, 1
    %p84 = por %p82, %p83
    %p86 = scmp.ne.s32.totalorder %s71, %s85
    %p87 = scmp.eq.s32.totalorder %s19, 0
    %p88 = por %p86, %p87
    %s90 = sadd.s32 %s89, 1
    %p93 = scmp.eq.s32.totalorder %s13, 1
    %p94 = scmp.ne.s32.totalorder %s89, %s91
    %p95 = scmp.eq.s32.totalorder %s13, 0
    %p96 = por %p94, %p95
    %p97 = scmp.ne.s32.totalorder %s89, %s91
    %p98 = scmp.eq.s32.totalorder %s18, 1
    %p99 = por %p97, %p98
    %p100 = scmp.ne.s32.totalorder %s91, %s92
    %p101 = scmp.eq.s32.totalorder %s18, 0
    %p102 = por %p100, %p101
    %p103 = scmp.ne.s32.totalorder %s91, %s92
    %p104 = scmp.eq.s32.totalorder %s19, 1
    %p105 = por %p103, %p104
    %p107 = scmp.ne.s32.totalorder %s92, %s106
    %p108 = scmp.eq.s32.totalorder %s19, 0
    %p109 = por %p107, %p108
    %s111 = sadd.s32 %s110, 1
    %p114 = scmp.eq.s32.totalorder %s13, 1
    %p115 = scmp.ne.s32.totalorder %s110, %s112
    %p116 = scmp.eq.s32.totalorder %s13, 0
    %p117 = por %p115, %p116
    %p118 = scmp.ne.s32.totalorder %s110, %s112
    %p119 = scmp.eq.s32.totalorder %s18, 1
    %p120 = por %p118, %p119
    %p121 = scmp.ne.s32.totalorder %s112, %s113
    %p122 = scmp.eq.s32.totalorder %s18, 0
    %p123 = por %p121, %p122
    %p124 = scmp.ne.s32.totalorder %s112, %s113
    %p125 = scmp.eq.s32.totalorder %s19, 1
    %p126 = por %p124, %p125
    %p128 = scmp.ne.s32.totalorder %s113, %s127
    %p129 = scmp.eq.s32.totalorder %s19, 0
    %p130 = por %p128, %p129
    %s132 = sadd.s32 %s131, 1
    %p135 = scmp.eq.s32.totalorder %s13, 1
    %p136 = scmp.ne.s32.totalorder %s131, %s133
    %p137 = scmp.eq.s32.totalorder %s13, 0
    %p138 = por %p136, %p137
    %p139 = scmp.ne.s32.totalorder %s131, %s133
    %p140 = scmp.eq.s32.totalorder %s18, 1
    %p141 = por %p139, %p140
    %p142 = scmp.ne.s32.totalorder %s133, %s134
    %p143 = scmp.eq.s32.totalorder %s18, 0
    %p144 = por %p142, %p143
    %p145 = scmp.ne.s32.totalorder %s133, %s134
    %p146 = scmp.eq.s32.totalorder %s19, 1
    %p147 = por %p145, %p146
    %p149 = scmp.ne.s32.totalorder %s134, %s148
    %p150 = scmp.eq.s32.totalorder %s19, 0
    %p151 = por %p149, %p150
    %s153 = sadd.s32 %s152, 1
    %p156 = scmp.eq.s32.totalorder %s13, 1
    %p157 = scmp.ne.s32.totalorder %s152, %s154
    %p158 = scmp.eq.s32.totalorder %s13, 0
    %p159 = por %p157, %p158
    %p160 = scmp.ne.s32.totalorder %s152, %s154
    %p161 = scmp.eq.s32.totalorder %s18, 1
    %p162 = por %p160, %p161
    %p163 = scmp.ne.s32.totalorder %s154, %s155
    %p164 = scmp.eq.s32.totalorder %s18, 0
    %p165 = por %p163, %p164
    %p166 = scmp.ne.s32.totalorder %s154, %s155
    %p167 = scmp.eq.s32.totalorder %s19, 1
    %p168 = por %p166, %p167
    %p170 = scmp.ne.s32.totalorder %s155, %s169
    %p171 = scmp.eq.s32.totalorder %s19, 0
    %p172 = por %p170, %p171
    %s173 = ssub.s32 %s13, %s20
    %p174 = scmp.eq.s32.totalorder %s173, 0
    %s176 = sadd.s32 %s175, 1
    %s177 = scalar_select %p174, %s175, %s176
    %p180 = pneg %p174
    %p181 = scmp.eq.s32.totalorder %s13, 1
    %p182 = por %p180, %p181
    %p183 = scmp.ne.s32.totalorder %s175, %s178
    %p184 = scmp.eq.s32.totalorder %s13, 0
    %p185 = por %p183, %p184
    %p186 = scmp.ne.s32.totalorder %s175, %s178
    %p187 = scmp.eq.s32.totalorder %s18, 1
    %p188 = por %p186, %p187
    %p189 = scmp.ne.s32.totalorder %s178, %s179
    %p190 = scmp.eq.s32.totalorder %s18, 0
    %p191 = por %p189, %p190
    %p192 = scmp.ne.s32.totalorder %s178, %s179
    %p193 = scmp.eq.s32.totalorder %s19, 1
    %p194 = por %p192, %p193
    %p196 = scmp.ne.s32.totalorder %s179, %s195
    %p197 = scmp.eq.s32.totalorder %s19, 0
    %p198 = por %p196, %p197
    %p199 = scmp.le.s32.totalorder 1, %s13
    %p200 = scmp.lt.s32.totalorder %s13, 3
    %p201 = pnand %p199, %p200
    %p202 = pneg %p201
    // Predicated region
    $region9: #{deep_made_forward.1} parent=5 // pred_check
      _
    $region10: #{deep_made_forward.1} parent=5 // pred_check_branch
      %204 = sbr.rel (%p201) target = $region12
    $region11: #{deep_made_forward.1} parent=5 // pred_region
      %s205 = ssub.s32 %s13, 1
      // Predicated region
      $region13: #{deep_made_forward.1} parent=11 // pred_check
        %p206 = pneg %p60
      $region14: #{deep_made_forward.1} parent=11 // pred_check_branch
        %208 = sbr.rel (%p206) target = $region16
      $region15: #{deep_made_forward.1} parent=11 // pred_region
        _
      $region16: #{deep_made_forward.1} parent=11 // pred_fallthru
        _
      // Predicated region
      $region17: #{deep_made_forward.1} parent=11 // pred_check
        %p209 = pneg %p81
      $region18: #{deep_made_forward.1} parent=11 // pred_check_branch
        %211 = sbr.rel (%p209) target = $region20
      $region19: #{deep_made_forward.1} parent=11 // pred_region
        _
      $region20: #{deep_made_forward.1} parent=11 // pred_fallthru
        _
      // Predicated region
      $region21: #{deep_made_forward.1} parent=11 // pred_check
        %p212 = pneg %p102
      $region22: #{deep_made_forward.1} parent=11 // pred_check_branch
        %214 = sbr.rel (%p212) target = $region24
      $region23: #{deep_made_forward.1} parent=11 // pred_region
        _
      $region24: #{deep_made_forward.1} parent=11 // pred_fallthru
        _
      // Predicated region
      $region25: #{deep_made_forward.1} parent=11 // pred_check
        %p215 = pneg %p123
      $region26: #{deep_made_forward.1} parent=11 // pred_check_branch
        %217 = sbr.rel (%p215) target = $region28
      $region27: #{deep_made_forward.1} parent=11 // pred_region
        _
      $region28: #{deep_made_forward.1} parent=11 // pred_fallthru
        _
      // Predicated region
      $region29: #{deep_made_forward.1} parent=11 // pred_check
        %p218 = pneg %p144
      $region30: #{deep_made_forward.1} parent=11 // pred_check_branch
        %220 = sbr.rel (%p218) target = $region32
      $region31: #{deep_made_forward.1} parent=11 // pred_region
        _
      $region32: #{deep_made_forward.1} parent=11 // pred_fallthru
        _
      // Predicated region
      $region33: #{deep_made_forward.1} parent=11 // pred_check
        %p221 = pneg %p165
      $region34: #{deep_made_forward.1} parent=11 // pred_check_branch
        %223 = sbr.rel (%p221) target = $region36
      $region35: #{deep_made_forward.1} parent=11 // pred_region
        _
      $region36: #{deep_made_forward.1} parent=11 // pred_fallthru
        _
    $region12: #{deep_made_forward.1} parent=5 // pred_fallthru
      _
    %p224 = scmp.lt.s32.totalorder %s13, 2
    // Predicated region
    $region37: #{deep_made_forward.1} parent=5 // pred_check
      %p225 = pneg %p224
    $region38: #{deep_made_forward.1} parent=5 // pred_check_branch
      %227 = sbr.rel (%p225) target = $region40
    $region39: #{deep_made_forward.1} parent=5 // pred_region
      // Predicated region
      $region41: #{deep_made_forward.1} parent=39 // pred_check
        %p228 = pneg %p33
      $region42: #{deep_made_forward.1} parent=39 // pred_check_branch
        %230 = sbr.rel (%p228) target = $region44
      $region43: #{deep_made_forward.1} parent=39 // pred_region
        %s231 = smul.u32 64, %s13
        %p232 = scmp.lt.s32.totalorder %s231, 127
        %s233 = scalar_select %p232, %s231, 127
        %s234 = smul.addr %s233, 8
        %s235 = scalar_lea.vmem %s0, %s234
        %s236 = smul.u32 64, %s13
      $region44: #{deep_made_forward.1} parent=39 // pred_fallthru
        _
    $region40: #{deep_made_forward.1} parent=5 // pred_fallthru
      _
    %p237 = scmp.le.s32.totalorder 1, %s13
    %p238 = scmp.lt.s32.totalorder %s13, 3
    %p239 = pnand %p237, %p238
    %p240 = pneg %p239
    // Predicated region
    $region45: #{deep_made_forward.1} parent=5 // pred_check
      _
    $region46: #{deep_made_forward.1} parent=5 // pred_check_branch
      %242 = sbr.rel (%p239) target = $region48
    $region47: #{deep_made_forward.1} parent=5 // pred_region
      %s243 = ssub.s32 %s13, 1
      %s244 = smul.u32 64, %s18
      %p245 = scmp.lt.s32.totalorder %s244, 127
      %s246 = scalar_select %p245, %s244, 127
      %s247 = smul.addr %s246, 8
      %s248 = scalar_lea.vmem %s0, %s247
      %p249 = pneg %p39
      %p250 = pneg %p36
      %p251 = pneg %p60
      %p252 = pneg %p57
      %p253 = pneg %p81
      %p254 = pneg %p78
      %p255 = pneg %p102
      %p256 = pneg %p99
      %p257 = pneg %p123
      %p258 = pneg %p120
      %p259 = pneg %p144
      %p260 = pneg %p141
      %p261 = pneg %p165
      %p262 = pneg %p162
      %p263 = pneg %p191
      %p264 = pneg %p188
      %s265 = smul.u32 64, %s18
      %p266 = scmp.lt.s32.totalorder %s265, 127
      %s267 = scalar_select %p266, %s265, 127
      %s268 = smul.addr %s267, 8
      %s269 = scalar_lea.vmem %s7, %s268
      %s270 = smul.u32 64, %s18
      %p271 = scmp.lt.s32.totalorder %s270, 127
      %s272 = scalar_select %p271, %s270, 127
      %s273 = smul.addr %s272, 8
      %s274 = scalar_lea.vmem %s0, %s273
      %s275 = smul.u32 64, %s18
      %s276 = smul.u32 64, %s18
      %p277 = scmp.lt.s32.totalorder %s276, 127
      %s278 = scalar_select %p277, %s276, 127
      %s279 = smul.addr %s278, 8
      %s280 = scalar_lea.vmem %s7, %s279
      %s281 = smul.u32 64, %s18
      %v283 = vld [vmem:[%s274] sm:$0xff]
      %v284 = vld [vmem:[%s274 + $0x8] sm:$0xff]
      %v285 = vld [vmem:[%s274 + $0x10] sm:$0xff]
      %v286 = vld [vmem:[%s274 + $0x18] sm:$0xff]
      %v287 = vld [vmem:[%s274 + $0x20] sm:$0xff]
      %v288 = vld [vmem:[%s274 + $0x28] sm:$0xff]
      %v289 = vld [vmem:[%s274 + $0x30] sm:$0xff]
      %v290 = vld [vmem:[%s274 + $0x38] sm:$0xff]
      %v291 = vld [vmem:[%s274 + $0x40] sm:$0xff]
      %v292 = vld [vmem:[%s274 + $0x48] sm:$0xff]
      %v293 = vld [vmem:[%s274 + $0x50] sm:$0xff]
      %v294 = vld [vmem:[%s274 + $0x58] sm:$0xff]
      %v295 = vld [vmem:[%s274 + $0x60] sm:$0xff]
      %v296 = vld [vmem:[%s274 + $0x68] sm:$0xff]
      %v297 = vld [vmem:[%s274 + $0x70] sm:$0xff]
      %v298 = vld [vmem:[%s274 + $0x78] sm:$0xff]
      %v299 = vld [vmem:[%s274 + $0x80] sm:$0xff]
      %v300 = vld [vmem:[%s274 + $0x88] sm:$0xff]
      %v301 = vld [vmem:[%s274 + $0x90] sm:$0xff]
      %v302 = vld [vmem:[%s274 + $0x98] sm:$0xff]
      %v303 = vld [vmem:[%s274 + $0xa0] sm:$0xff]
      %v304 = vld [vmem:[%s274 + $0xa8] sm:$0xff]
      %v305 = vld [vmem:[%s274 + $0xb0] sm:$0xff]
      %v306 = vld [vmem:[%s274 + $0xb8] sm:$0xff]
      %v307 = vld [vmem:[%s274 + $0xc0] sm:$0xff]
      %v308 = vld [vmem:[%s274 + $0xc8] sm:$0xff]
      %v309 = vld [vmem:[%s274 + $0xd0] sm:$0xff]
      %v310 = vld [vmem:[%s274 + $0xd8] sm:$0xff]
      %v311 = vld [vmem:[%s274 + $0xe0] sm:$0xff]
      %v312 = vld [vmem:[%s274 + $0xe8] sm:$0xff]
      %v313 = vld [vmem:[%s274 + $0xf0] sm:$0xff]
      %v314 = vld [vmem:[%s274 + $0xf8] sm:$0xff]
      %v315 = vld [vmem:[%s274 + $0x100] sm:$0xff]
      %v316 = vld [vmem:[%s274 + $0x108] sm:$0xff]
      %v317 = vld [vmem:[%s274 + $0x110] sm:$0xff]
      %v318 = vld [vmem:[%s274 + $0x118] sm:$0xff]
      %v319 = vld [vmem:[%s274 + $0x120] sm:$0xff]
      %v320 = vld [vmem:[%s274 + $0x128] sm:$0xff]
      %v321 = vld [vmem:[%s274 + $0x130] sm:$0xff]
      %v322 = vld [vmem:[%s274 + $0x138] sm:$0xff]
      %v323 = vld [vmem:[%s274 + $0x140] sm:$0xff]
      %v324 = vld [vmem:[%s274 + $0x148] sm:$0xff]
      %v325 = vld [vmem:[%s274 + $0x150] sm:$0xff]
      %v326 = vld [vmem:[%s274 + $0x158] sm:$0xff]
      %v327 = vld [vmem:[%s274 + $0x160] sm:$0xff]
      %v328 = vld [vmem:[%s274 + $0x168] sm:$0xff]
      %v329 = vld [vmem:[%s274 + $0x170] sm:$0xff]
      %v330 = vld [vmem:[%s274 + $0x178] sm:$0xff]
      %v331 = vld [vmem:[%s274 + $0x180] sm:$0xff]
      %v332 = vld [vmem:[%s274 + $0x188] sm:$0xff]
      %v333 = vld [vmem:[%s274 + $0x190] sm:$0xff]
      %v334 = vld [vmem:[%s274 + $0x198] sm:$0xff]
      %v335 = vld [vmem:[%s274 + $0x1a0] sm:$0xff]
      %v336 = vld [vmem:[%s274 + $0x1a8] sm:$0xff]
      %v337 = vld [vmem:[%s274 + $0x1b0] sm:$0xff]
      %v338 = vld [vmem:[%s274 + $0x1b8] sm:$0xff]
      %v339 = vld [vmem:[%s274 + $0x1c0] sm:$0xff]
      %v340 = vld [vmem:[%s274 + $0x1c8] sm:$0xff]
      %v341 = vld [vmem:[%s274 + $0x1d0] sm:$0xff]
      %v342 = vld [vmem:[%s274 + $0x1d8] sm:$0xff]
      %v343 = vld [vmem:[%s274 + $0x1e0] sm:$0xff]
      %v344 = vld [vmem:[%s274 + $0x1e8] sm:$0xff]
      %v345 = vld [vmem:[%s274 + $0x1f0] sm:$0xff]
      %v346 = vld [vmem:[%s274 + $0x1f8] sm:$0xff]
      %v347 = vpack.c.bf16 %v284, %v283
      %v348 = vpack.c.bf16 %v286, %v285
      %v349 = vpack.c.bf16 %v288, %v287
      %v350 = vpack.c.bf16 %v290, %v289
      %v351 = vpack.c.bf16 %v292, %v291
      %v352 = vpack.c.bf16 %v294, %v293
      %v353 = vpack.c.bf16 %v296, %v295
      %v354 = vpack.c.bf16 %v298, %v297
      %v355 = vpack.c.bf16 %v300, %v299
      %v356 = vpack.c.bf16 %v302, %v301
      %v357 = vpack.c.bf16 %v304, %v303
      %v358 = vpack.c.bf16 %v306, %v305
      %v359 = vpack.c.bf16 %v308, %v307
      %v360 = vpack.c.bf16 %v310, %v309
      %v361 = vpack.c.bf16 %v312, %v311
      %v362 = vpack.c.bf16 %v314, %v313
      %v363 = vpack.c.bf16 %v316, %v315
      %v364 = vpack.c.bf16 %v318, %v317
      %v365 = vpack.c.bf16 %v320, %v319
      %v366 = vpack.c.bf16 %v322, %v321
      %v367 = vpack.c.bf16 %v324, %v323
      %v368 = vpack.c.bf16 %v326, %v325
      %v369 = vpack.c.bf16 %v328, %v327
      %v370 = vpack.c.bf16 %v330, %v329
      %v371 = vpack.c.bf16 %v332, %v331
      %v372 = vpack.c.bf16 %v334, %v333
      %v373 = vpack.c.bf16 %v336, %v335
      %v374 = vpack.c.bf16 %v338, %v337
      %v375 = vpack.c.bf16 %v340, %v339
      %v376 = vpack.c.bf16 %v342, %v341
      %v377 = vpack.c.bf16 %v344, %v343
      %v378 = vpack.c.bf16 %v346, %v345
      %v379 = vld [vmem:[%s1] sm:$0xf]
      %v380 = vld [vmem:[%s1 + $0x4] sm:$0xf]
      %v381 = vld [vmem:[%s4] sm:$0x1]
      %v383 = vlaneseq
      %v384 = vshrl.u32 %v383, 7
      %v385 = vsub.s32 0, %v384
      %v386 = vrot.slane %v381, %v385
      %v390 = vunpack.c.l.b16 %v379
      %v391 = vunpack.c.l.b16 %v380
      %v392 = vpack.c.b16 %v391, %v390
      %vm394 = vcmask 130048
      %v396 = vsel %vm394, %v347, 0
      %v399 = vsel %vm394, %v348, 0
      %v402 = vsel %vm394, %v349, 0
      %v405 = vsel %vm394, %v350, 0
      %v408 = vsel %vm394, %v351, 0
      %v411 = vsel %vm394, %v352, 0
      %v414 = vsel %vm394, %v353, 0
      %v417 = vsel %vm394, %v354, 0
      %v420 = vsel %vm394, %v355, 0
      %v423 = vsel %vm394, %v356, 0
      %v426 = vsel %vm394, %v357, 0
      %v429 = vsel %vm394, %v358, 0
      %v432 = vsel %vm394, %v359, 0
      %v435 = vsel %vm394, %v360, 0
      %v438 = vsel %vm394, %v361, 0
      %v441 = vsel %vm394, %v362, 0
      %v444 = vsel %vm394, %v363, 0
      %v447 = vsel %vm394, %v364, 0
      %v450 = vsel %vm394, %v365, 0
      %v453 = vsel %vm394, %v366, 0
      %v456 = vsel %vm394, %v367, 0
      %v459 = vsel %vm394, %v368, 0
      %v462 = vsel %vm394, %v369, 0
      %v465 = vsel %vm394, %v370, 0
      %v468 = vsel %vm394, %v371, 0
      %v471 = vsel %vm394, %v372, 0
      %v474 = vsel %vm394, %v373, 0
      %v477 = vsel %vm394, %v374, 0
      %v480 = vsel %vm394, %v375, 0
      %v483 = vsel %vm394, %v376, 0
      %v486 = vsel %vm394, %v377, 0
      %v489 = vsel %vm394, %v378, 0
      %491 = vmatprep.subr.bf16.mxu0 0
      %492 = vmatpush1.bf16.msra.mxu0 0
      %493 = vmatprep.subr.bf16.mxu0 0
      %494 = vmatpush1.bf16.msra.mxu0 0
      %495 = vmatprep.subr.bf16.mxu0 0
      %496 = vmatpush1.bf16.msra.mxu0 0
      %497 = vmatprep.subr.bf16.mxu0 0
      %498 = vmatpush1.bf16.msra.mxu0 0
      %499 = vmatprep.subr.bf16.mxu0 0
      %500 = vmatpush1.bf16.msra.mxu0 0
      %501 = vmatprep.subr.bf16.mxu0 0
      %502 = vmatpush1.bf16.msra.mxu0 0
      %503 = vmatprep.subr.bf16.mxu0 0
      %504 = vmatpush1.bf16.msra.mxu0 0
      %505 = vmatprep.subr.bf16.mxu0 0
      %506 = vmatpush1.bf16.msra.mxu0 %v392
      %507 = vmatprep.subr.bf16.mxu0 0
      %508 = vmatpush2.bf16.msra.mxu0 0
      %509 = vmatprep.subr.bf16.mxu0 0
      %510 = vmatpush2.bf16.msra.mxu0 0
      %511 = vmatprep.subr.bf16.mxu0 0
      %512 = vmatpush2.bf16.msra.mxu0 0
      %513 = vmatprep.subr.bf16.mxu0 0
      %514 = vmatpush2.bf16.msra.mxu0 0
      %515 = vmatprep.subr.bf16.mxu0 0
      %516 = vmatpush2.bf16.msra.mxu0 0
      %517 = vmatprep.subr.bf16.mxu0 0
      %518 = vmatpush2.bf16.msra.mxu0 0
      %519 = vmatprep.subr.bf16.mxu0 0
      %520 = vmatpush2.bf16.msra.mxu0 0
      %521 = vmatprep.subr.bf16.mxu0 0
      %522 = vmatpush2.bf16.msra.mxu0 0
      %523 = vmatprep.mubr.bf16.mxu0 0
      %524 = vmatmul.mubr.bf16.gmra.mxu0 %v396
      %v525 = vpop.f32.mrf.mxu0
      %v526 = vadd.f32 %v386, %v525
      %v527 = vpop.f32.mrf.mxu0
      %v528 = vpop.f32.mrf.mxu0
      %v529 = vadd.f32 %v386, %v528
      %v530 = vpop.f32.mrf.mxu0
      %531 = vmatprep.mubr.bf16.mxu0 0
      %532 = vmatmul.mubr.bf16.gmra.mxu0 %v399
      %v533 = vpop.f32.mrf.mxu0
      %v534 = vadd.f32 %v386, %v533
      %v535 = vpop.f32.mrf.mxu0
      %v536 = vpop.f32.mrf.mxu0
      %v537 = vadd.f32 %v386, %v536
      %v538 = vpop.f32.mrf.mxu0
      %539 = vmatprep.mubr.bf16.mxu0 0
      %540 = vmatmul.mubr.bf16.gmra.mxu0 %v402
      %v541 = vpop.f32.mrf.mxu0
      %v542 = vadd.f32 %v386, %v541
      %v543 = vpop.f32.mrf.mxu0
      %v544 = vpop.f32.mrf.mxu0
      %v545 = vadd.f32 %v386, %v544
      %v546 = vpop.f32.mrf.mxu0
      %547 = vmatprep.mubr.bf16.mxu0 0
      %548 = vmatmul.mubr.bf16.gmra.mxu0 %v405
      %v549 = vpop.f32.mrf.mxu0
      %v550 = vadd.f32 %v386, %v549
      %v551 = vpop.f32.mrf.mxu0
      %v552 = vpop.f32.mrf.mxu0
      %v553 = vadd.f32 %v386, %v552
      %v554 = vpop.f32.mrf.mxu0
      %555 = vmatprep.mubr.bf16.mxu0 0
      %556 = vmatmul.mubr.bf16.gmra.mxu0 %v408
      %v557 = vpop.f32.mrf.mxu0
      %v558 = vadd.f32 %v386, %v557
      %v559 = vpop.f32.mrf.mxu0
      %v560 = vpop.f32.mrf.mxu0
      %v561 = vadd.f32 %v386, %v560
      %v562 = vpop.f32.mrf.mxu0
      %563 = vmatprep.mubr.bf16.mxu0 0
      %564 = vmatmul.mubr.bf16.gmra.mxu0 %v411
      %v565 = vpop.f32.mrf.mxu0
      %v566 = vadd.f32 %v386, %v565
      %v567 = vpop.f32.mrf.mxu0
      %v568 = vpop.f32.mrf.mxu0
      %v569 = vadd.f32 %v386, %v568
      %v570 = vpop.f32.mrf.mxu0
      %571 = vmatprep.mubr.bf16.mxu0 0
      %572 = vmatmul.mubr.bf16.gmra.mxu0 %v414
      %v573 = vpop.f32.mrf.mxu0
      %v574 = vadd.f32 %v386, %v573
      %v575 = vpop.f32.mrf.mxu0
      %v576 = vpop.f32.mrf.mxu0
      %v577 = vadd.f32 %v386, %v576
      %v578 = vpop.f32.mrf.mxu0
      %579 = vmatprep.mubr.bf16.mxu0 0
      %580 = vmatmul.mubr.bf16.gmra.mxu0 %v417
      %v581 = vpop.f32.mrf.mxu0
      %v582 = vadd.f32 %v386, %v581
      %v583 = vpop.f32.mrf.mxu0
      %v584 = vpop.f32.mrf.mxu0
      %v585 = vadd.f32 %v386, %v584
      %v586 = vpop.f32.mrf.mxu0
      %587 = vmatprep.mubr.bf16.mxu0 0
      %588 = vmatmul.mubr.bf16.gmra.mxu0 %v420
      %v589 = vpop.f32.mrf.mxu0
      %v590 = vadd.f32 %v386, %v589
      %v591 = vpop.f32.mrf.mxu0
      %v592 = vpop.f32.mrf.mxu0
      %v593 = vadd.f32 %v386, %v592
      %v594 = vpop.f32.mrf.mxu0
      %595 = vmatprep.mubr.bf16.mxu0 0
      %596 = vmatmul.mubr.bf16.gmra.mxu0 %v423
      %v597 = vpop.f32.mrf.mxu0
      %v598 = vadd.f32 %v386, %v597
      %v599 = vpop.f32.mrf.mxu0
      %v600 = vpop.f32.mrf.mxu0
      %v601 = vadd.f32 %v386, %v600
      %v602 = vpop.f32.mrf.mxu0
      %603 = vmatprep.mubr.bf16.mxu0 0
      %604 = vmatmul.mubr.bf16.gmra.mxu0 %v426
      %v605 = vpop.f32.mrf.mxu0
      %v606 = vadd.f32 %v386, %v605
      %v607 = vpop.f32.mrf.mxu0
      %v608 = vpop.f32.mrf.mxu0
      %v609 = vadd.f32 %v386, %v608
      %v610 = vpop.f32.mrf.mxu0
      %611 = vmatprep.mubr.bf16.mxu0 0
      %612 = vmatmul.mubr.bf16.gmra.mxu0 %v429
      %v613 = vpop.f32.mrf.mxu0
      %v614 = vadd.f32 %v386, %v613
      %v615 = vpop.f32.mrf.mxu0
      %v616 = vpop.f32.mrf.mxu0
      %v617 = vadd.f32 %v386, %v616
      %v618 = vpop.f32.mrf.mxu0
      %619 = vmatprep.mubr.bf16.mxu0 0
      %620 = vmatmul.mubr.bf16.gmra.mxu0 %v432
      %v621 = vpop.f32.mrf.mxu0
      %v622 = vadd.f32 %v386, %v621
      %v623 = vpop.f32.mrf.mxu0
      %v624 = vpop.f32.mrf.mxu0
      %v625 = vadd.f32 %v386, %v624
      %v626 = vpop.f32.mrf.mxu0
      %627 = vmatprep.mubr.bf16.mxu0 0
      %628 = vmatmul.mubr.bf16.gmra.mxu0 %v435
      %v629 = vpop.f32.mrf.mxu0
      %v630 = vadd.f32 %v386, %v629
      %v631 = vpop.f32.mrf.mxu0
      %v632 = vpop.f32.mrf.mxu0
      %v633 = vadd.f32 %v386, %v632
      %v634 = vpop.f32.mrf.mxu0
      %635 = vmatprep.mubr.bf16.mxu0 0
      %636 = vmatmul.mubr.bf16.gmra.mxu0 %v438
      %v637 = vpop.f32.mrf.mxu0
      %v638 = vadd.f32 %v386, %v637
      %v639 = vpop.f32.mrf.mxu0
      %v640 = vpop.f32.mrf.mxu0
      %v641 = vadd.f32 %v386, %v640
      %v642 = vpop.f32.mrf.mxu0
      %643 = vmatprep.mubr.bf16.mxu0 0
      %644 = vmatmul.mubr.bf16.gmra.mxu0 %v441
      %v645 = vpop.f32.mrf.mxu0
      %v646 = vadd.f32 %v386, %v645
      %v647 = vpop.f32.mrf.mxu0
      %v648 = vpop.f32.mrf.mxu0
      %v649 = vadd.f32 %v386, %v648
      %v650 = vpop.f32.mrf.mxu0
      %651 = vmatprep.mubr.bf16.mxu0 0
      %652 = vmatmul.mubr.bf16.gmra.mxu0 %v444
      %v653 = vpop.f32.mrf.mxu0
      %v654 = vadd.f32 %v386, %v653
      %v655 = vpop.f32.mrf.mxu0
      %v656 = vpop.f32.mrf.mxu0
      %v657 = vadd.f32 %v386, %v656
      %v658 = vpop.f32.mrf.mxu0
      %659 = vmatprep.mubr.bf16.mxu0 0
      %660 = vmatmul.mubr.bf16.gmra.mxu0 %v447
      %v661 = vpop.f32.mrf.mxu0
      %v662 = vadd.f32 %v386, %v661
      %v663 = vpop.f32.mrf.mxu0
      %v664 = vpop.f32.mrf.mxu0
      %v665 = vadd.f32 %v386, %v664
      %v666 = vpop.f32.mrf.mxu0
      %667 = vmatprep.mubr.bf16.mxu0 0
      %668 = vmatmul.mubr.bf16.gmra.mxu0 %v450
      %v669 = vpop.f32.mrf.mxu0
      %v670 = vadd.f32 %v386, %v669
      %v671 = vpop.f32.mrf.mxu0
      %v672 = vpop.f32.mrf.mxu0
      %v673 = vadd.f32 %v386, %v672
      %v674 = vpop.f32.mrf.mxu0
      %675 = vmatprep.mubr.bf16.mxu0 0
      %676 = vmatmul.mubr.bf16.gmra.mxu0 %v453
      %v677 = vpop.f32.mrf.mxu0
      %v678 = vadd.f32 %v386, %v677
      %v679 = vpop.f32.mrf.mxu0
      %v680 = vpop.f32.mrf.mxu0
      %v681 = vadd.f32 %v386, %v680
      %v682 = vpop.f32.mrf.mxu0
      %683 = vmatprep.mubr.bf16.mxu0 0
      %684 = vmatmul.mubr.bf16.gmra.mxu0 %v456
      %v685 = vpop.f32.mrf.mxu0
      %v686 = vadd.f32 %v386, %v685
      %v687 = vpop.f32.mrf.mxu0
      %v688 = vpop.f32.mrf.mxu0
      %v689 = vadd.f32 %v386, %v688
      %v690 = vpop.f32.mrf.mxu0
      %691 = vmatprep.mubr.bf16.mxu0 0
      %692 = vmatmul.mubr.bf16.gmra.mxu0 %v459
      %v693 = vpop.f32.mrf.mxu0
      %v694 = vadd.f32 %v386, %v693
      %v695 = vpop.f32.mrf.mxu0
      %v696 = vpop.f32.mrf.mxu0
      %v697 = vadd.f32 %v386, %v696
      %v698 = vpop.f32.mrf.mxu0
      %699 = vmatprep.mubr.bf16.mxu0 0
      %700 = vmatmul.mubr.bf16.gmra.mxu0 %v462
      %v701 = vpop.f32.mrf.mxu0
      %v702 = vadd.f32 %v386, %v701
      %v703 = vpop.f32.mrf.mxu0
      %v704 = vpop.f32.mrf.mxu0
      %v705 = vadd.f32 %v386, %v704
      %v706 = vpop.f32.mrf.mxu0
      %707 = vmatprep.mubr.bf16.mxu0 0
      %708 = vmatmul.mubr.bf16.gmra.mxu0 %v465
      %v709 = vpop.f32.mrf.mxu0
      %v710 = vadd.f32 %v386, %v709
      %v711 = vpop.f32.mrf.mxu0
      %v712 = vpop.f32.mrf.mxu0
      %v713 = vadd.f32 %v386, %v712
      %v714 = vpop.f32.mrf.mxu0
      %715 = vmatprep.mubr.bf16.mxu0 0
      %716 = vmatmul.mubr.bf16.gmra.mxu0 %v468
      %v717 = vpop.f32.mrf.mxu0
      %v718 = vadd.f32 %v386, %v717
      %v719 = vpop.f32.mrf.mxu0
      %v720 = vpop.f32.mrf.mxu0
      %v721 = vadd.f32 %v386, %v720
      %v722 = vpop.f32.mrf.mxu0
      %723 = vmatprep.mubr.bf16.mxu0 0
      %724 = vmatmul.mubr.bf16.gmra.mxu0 %v471
      %v725 = vpop.f32.mrf.mxu0
      %v726 = vadd.f32 %v386, %v725
      %v727 = vpop.f32.mrf.mxu0
      %v728 = vpop.f32.mrf.mxu0
      %v729 = vadd.f32 %v386, %v728
      %v730 = vpop.f32.mrf.mxu0
      %731 = vmatprep.mubr.bf16.mxu0 0
      %732 = vmatmul.mubr.bf16.gmra.mxu0 %v474
      %v733 = vpop.f32.mrf.mxu0
      %v734 = vadd.f32 %v386, %v733
      %v735 = vpop.f32.mrf.mxu0
      %v736 = vpop.f32.mrf.mxu0
      %v737 = vadd.f32 %v386, %v736
      %v738 = vpop.f32.mrf.mxu0
      %739 = vmatprep.mubr.bf16.mxu0 0
      %740 = vmatmul.mubr.bf16.gmra.mxu0 %v477
      %v741 = vpop.f32.mrf.mxu0
      %v742 = vadd.f32 %v386, %v741
      %v743 = vpop.f32.mrf.mxu0
      %v744 = vpop.f32.mrf.mxu0
      %v745 = vadd.f32 %v386, %v744
      %v746 = vpop.f32.mrf.mxu0
      %747 = vmatprep.mubr.bf16.mxu0 0
      %748 = vmatmul.mubr.bf16.gmra.mxu0 %v480
      %v749 = vpop.f32.mrf.mxu0
      %v750 = vadd.f32 %v386, %v749
      %v751 = vpop.f32.mrf.mxu0
      %v752 = vpop.f32.mrf.mxu0
      %v753 = vadd.f32 %v386, %v752
      %v754 = vpop.f32.mrf.mxu0
      %755 = vmatprep.mubr.bf16.mxu0 0
      %756 = vmatmul.mubr.bf16.gmra.mxu0 %v483
      %v757 = vpop.f32.mrf.mxu0
      %v758 = vadd.f32 %v386, %v757
      %v759 = vpop.f32.mrf.mxu0
      %v760 = vpop.f32.mrf.mxu0
      %v761 = vadd.f32 %v386, %v760
      %v762 = vpop.f32.mrf.mxu0
      %763 = vmatprep.mubr.bf16.mxu0 0
      %764 = vmatmul.mubr.bf16.gmra.mxu0 %v486
      %v765 = vpop.f32.mrf.mxu0
      %v766 = vadd.f32 %v386, %v765
      %v767 = vpop.f32.mrf.mxu0
      %v768 = vpop.f32.mrf.mxu0
      %v769 = vadd.f32 %v386, %v768
      %v770 = vpop.f32.mrf.mxu0
      %771 = vmatprep.mubr.bf16.mxu0 0
      %772 = vmatmul.mubr.bf16.gmra.mxu0 %v489
      %v773 = vpop.f32.mrf.mxu0
      %v774 = vadd.f32 %v386, %v773
      %v775 = vpop.f32.mrf.mxu0
      %v776 = vpop.f32.mrf.mxu0
      %v777 = vadd.f32 %v386, %v776
      %v778 = vpop.f32.mrf.mxu0
      %779 = vdwg.mxu0
      %v780 = vpack.c.bf16 %v529, %v526
      %v781 = vpack.c.bf16 %v537, %v534
      %v782 = vpack.c.bf16 %v545, %v542
      %v783 = vpack.c.bf16 %v553, %v550
      %v784 = vpack.c.bf16 %v561, %v558
      %v785 = vpack.c.bf16 %v569, %v566
      %v786 = vpack.c.bf16 %v577, %v574
      %v787 = vpack.c.bf16 %v585, %v582
      %v788 = vpack.c.bf16 %v593, %v590
      %v789 = vpack.c.bf16 %v601, %v598
      %v790 = vpack.c.bf16 %v609, %v606
      %v791 = vpack.c.bf16 %v617, %v614
      %v792 = vpack.c.bf16 %v625, %v622
      %v793 = vpack.c.bf16 %v633, %v630
      %v794 = vpack.c.bf16 %v641, %v638
      %v795 = vpack.c.bf16 %v649, %v646
      %v796 = vpack.c.bf16 %v657, %v654
      %v797 = vpack.c.bf16 %v665, %v662
      %v798 = vpack.c.bf16 %v673, %v670
      %v799 = vpack.c.bf16 %v681, %v678
      %v800 = vpack.c.bf16 %v689, %v686
      %v801 = vpack.c.bf16 %v697, %v694
      %v802 = vpack.c.bf16 %v705, %v702
      %v803 = vpack.c.bf16 %v713, %v710
      %v804 = vpack.c.bf16 %v721, %v718
      %v805 = vpack.c.bf16 %v729, %v726
      %v806 = vpack.c.bf16 %v737, %v734
      %v807 = vpack.c.bf16 %v745, %v742
      %v808 = vpack.c.bf16 %v753, %v750
      %v809 = vpack.c.bf16 %v761, %v758
      %v810 = vpack.c.bf16 %v769, %v766
      %v811 = vpack.c.bf16 %v777, %v774
      %v812 = vld [vmem:[%s2] sm:$0xf]
      %v813 = vld [vmem:[%s2 + $0x4] sm:$0xf]
      %v814 = vld [vmem:[%s2 + $0x8] sm:$0xf]
      %v815 = vld [vmem:[%s2 + $0xc] sm:$0xf]
      %v816 = vld [vmem:[%s2 + $0x10] sm:$0xf]
      %v817 = vld [vmem:[%s2 + $0x14] sm:$0xf]
      %v818 = vld [vmem:[%s2 + $0x18] sm:$0xf]
      %v819 = vld [vmem:[%s2 + $0x1c] sm:$0xf]
      %v820 = vld [vmem:[%s2 + $0x20] sm:$0xf]
      %v821 = vld [vmem:[%s2 + $0x24] sm:$0xf]
      %v822 = vld [vmem:[%s2 + $0x28] sm:$0xf]
      %v823 = vld [vmem:[%s2 + $0x2c] sm:$0xf]
      %v824 = vld [vmem:[%s2 + $0x30] sm:$0xf]
      %v825 = vld [vmem:[%s2 + $0x34] sm:$0xf]
      %v826 = vld [vmem:[%s2 + $0x38] sm:$0xf]
      %v827 = vld [vmem:[%s2 + $0x3c] sm:$0xf]
      %v828 = vld [vmem:[%s5] sm:$0x1]
      %v830 = vlaneseq
      %v831 = vshrl.u32 %v830, 7
      %v832 = vsub.s32 0, %v831
      %v833 = vrot.slane %v828, %v832
      %v851 = vunpack.c.l.b16 %v812
      %v852 = vunpack.c.l.b16 %v813
      %v853 = vunpack.c.l.b16 %v814
      %v854 = vunpack.c.l.b16 %v815
      %v855 = vunpack.c.l.b16 %v816
      %v856 = vunpack.c.l.b16 %v817
      %v857 = vunpack.c.l.b16 %v818
      %v858 = vunpack.c.l.b16 %v819
      %v859 = vunpack.c.l.b16 %v820
      %v860 = vunpack.c.l.b16 %v821
      %v861 = vunpack.c.l.b16 %v822
      %v862 = vunpack.c.l.b16 %v823
      %v863 = vunpack.c.l.b16 %v824
      %v864 = vunpack.c.l.b16 %v825
      %v865 = vunpack.c.l.b16 %v826
      %v866 = vunpack.c.l.b16 %v827
      %v867 = vpack.c.b16 %v852, %v851
      %v868 = vpack.c.b16 %v854, %v853
      %v869 = vpack.c.b16 %v856, %v855
      %v870 = vpack.c.b16 %v858, %v857
      %v871 = vpack.c.b16 %v860, %v859
      %v872 = vpack.c.b16 %v862, %v861
      %v873 = vpack.c.b16 %v864, %v863
      %v874 = vpack.c.b16 %v866, %v865
      %883 = vmatprep.subr.bf16.mxu0 0
      %884 = vmatpush1.bf16.msra.mxu0 %v874
      %885 = vmatprep.subr.bf16.mxu0 0
      %886 = vmatpush1.bf16.msra.mxu0 %v873
      %887 = vmatprep.subr.bf16.mxu0 0
      %888 = vmatpush1.bf16.msra.mxu0 %v872
      %889 = vmatprep.subr.bf16.mxu0 0
      %890 = vmatpush1.bf16.msra.mxu0 %v871
      %891 = vmatprep.subr.bf16.mxu0 0
      %892 = vmatpush1.bf16.msra.mxu0 %v870
      %893 = vmatprep.subr.bf16.mxu0 0
      %894 = vmatpush1.bf16.msra.mxu0 %v869
      %895 = vmatprep.subr.bf16.mxu0 0
      %896 = vmatpush1.bf16.msra.mxu0 %v868
      %897 = vmatprep.subr.bf16.mxu0 0
      %898 = vmatpush1.bf16.msra.mxu0 %v867
      %899 = vmatprep.subr.bf16.mxu0 0
      %900 = vmatpush2.bf16.msra.mxu0 0
      %901 = vmatprep.subr.bf16.mxu0 0
      %902 = vmatpush2.bf16.msra.mxu0 0
      %903 = vmatprep.subr.bf16.mxu0 0
      %904 = vmatpush2.bf16.msra.mxu0 0
      %905 = vmatprep.subr.bf16.mxu0 0
      %906 = vmatpush2.bf16.msra.mxu0 0
      %907 = vmatprep.subr.bf16.mxu0 0
      %908 = vmatpush2.bf16.msra.mxu0 0
      %909 = vmatprep.subr.bf16.mxu0 0
      %910 = vmatpush2.bf16.msra.mxu0 0
      %911 = vmatprep.subr.bf16.mxu0 0
      %912 = vmatpush2.bf16.msra.mxu0 0
      %913 = vmatprep.subr.bf16.mxu0 0
      %914 = vmatpush2.bf16.msra.mxu0 0
      %915 = vmatprep.mubr.bf16.mxu0 0
      %916 = vmatmul.mubr.bf16.gmra.mxu0 %v780
      %v917 = vpop.f32.mrf.mxu0
      %v918 = vadd.f32 %v833, %v917
      %v919 = vpop.f32.mrf.mxu0
      %v920 = vpop.f32.mrf.mxu0
      %v921 = vadd.f32 %v833, %v920
      %v922 = vpop.f32.mrf.mxu0
      %923 = vmatprep.mubr.bf16.mxu0 0
      %924 = vmatmul.mubr.bf16.gmra.mxu0 %v781
      %v925 = vpop.f32.mrf.mxu0
      %v926 = vadd.f32 %v833, %v925
      %v927 = vpop.f32.mrf.mxu0
      %v928 = vpop.f32.mrf.mxu0
      %v929 = vadd.f32 %v833, %v928
      %v930 = vpop.f32.mrf.mxu0
      %931 = vmatprep.mubr.bf16.mxu0 0
      %932 = vmatmul.mubr.bf16.gmra.mxu0 %v782
      %v933 = vpop.f32.mrf.mxu0
      %v934 = vadd.f32 %v833, %v933
      %v935 = vpop.f32.mrf.mxu0
      %v936 = vpop.f32.mrf.mxu0
      %v937 = vadd.f32 %v833, %v936
      %v938 = vpop.f32.mrf.mxu0
      %939 = vmatprep.mubr.bf16.mxu0 0
      %940 = vmatmul.mubr.bf16.gmra.mxu0 %v783
      %v941 = vpop.f32.mrf.mxu0
      %v942 = vadd.f32 %v833, %v941
      %v943 = vpop.f32.mrf.mxu0
      %v944 = vpop.f32.mrf.mxu0
      %v945 = vadd.f32 %v833, %v944
      %v946 = vpop.f32.mrf.mxu0
      %947 = vmatprep.mubr.bf16.mxu0 0
      %948 = vmatmul.mubr.bf16.gmra.mxu0 %v784
      %v949 = vpop.f32.mrf.mxu0
      %v950 = vadd.f32 %v833, %v949
      %v951 = vpop.f32.mrf.mxu0
      %v952 = vpop.f32.mrf.mxu0
      %v953 = vadd.f32 %v833, %v952
      %v954 = vpop.f32.mrf.mxu0
      %955 = vmatprep.mubr.bf16.mxu0 0
      %956 = vmatmul.mubr.bf16.gmra.mxu0 %v785
      %v957 = vpop.f32.mrf.mxu0
      %v958 = vadd.f32 %v833, %v957
      %v959 = vpop.f32.mrf.mxu0
      %v960 = vpop.f32.mrf.mxu0
      %v961 = vadd.f32 %v833, %v960
      %v962 = vpop.f32.mrf.mxu0
      %963 = vmatprep.mubr.bf16.mxu0 0
      %964 = vmatmul.mubr.bf16.gmra.mxu0 %v786
      %v965 = vpop.f32.mrf.mxu0
      %v966 = vadd.f32 %v833, %v965
      %v967 = vpop.f32.mrf.mxu0
      %v968 = vpop.f32.mrf.mxu0
      %v969 = vadd.f32 %v833, %v968
      %v970 = vpop.f32.mrf.mxu0
      %971 = vmatprep.mubr.bf16.mxu0 0
      %972 = vmatmul.mubr.bf16.gmra.mxu0 %v787
      %v973 = vpop.f32.mrf.mxu0
      %v974 = vadd.f32 %v833, %v973
      %v975 = vpop.f32.mrf.mxu0
      %v976 = vpop.f32.mrf.mxu0
      %v977 = vadd.f32 %v833, %v976
      %v978 = vpop.f32.mrf.mxu0
      %979 = vmatprep.mubr.bf16.mxu0 0
      %980 = vmatmul.mubr.bf16.gmra.mxu0 %v788
      %v981 = vpop.f32.mrf.mxu0
      %v982 = vadd.f32 %v833, %v981
      %v983 = vpop.f32.mrf.mxu0
      %v984 = vpop.f32.mrf.mxu0
      %v985 = vadd.f32 %v833, %v984
      %v986 = vpop.f32.mrf.mxu0
      %987 = vmatprep.mubr.bf16.mxu0 0
      %988 = vmatmul.mubr.bf16.gmra.mxu0 %v789
      %v989 = vpop.f32.mrf.mxu0
      %v990 = vadd.f32 %v833, %v989
      %v991 = vpop.f32.mrf.mxu0
      %v992 = vpop.f32.mrf.mxu0
      %v993 = vadd.f32 %v833, %v992
      %v994 = vpop.f32.mrf.mxu0
      %995 = vmatprep.mubr.bf16.mxu0 0
      %996 = vmatmul.mubr.bf16.gmra.mxu0 %v790
      %v997 = vpop.f32.mrf.mxu0
      %v998 = vadd.f32 %v833, %v997
      %v999 = vpop.f32.mrf.mxu0
      %v1000 = vpop.f32.mrf.mxu0
      %v1001 = vadd.f32 %v833, %v1000
      %v1002 = vpop.f32.mrf.mxu0
      %1003 = vmatprep.mubr.bf16.mxu0 0
      %1004 = vmatmul.mubr.bf16.gmra.mxu0 %v791
      %v1005 = vpop.f32.mrf.mxu0
      %v1006 = vadd.f32 %v833, %v1005
      %v1007 = vpop.f32.mrf.mxu0
      %v1008 = vpop.f32.mrf.mxu0
      %v1009 = vadd.f32 %v833, %v1008
      %v1010 = vpop.f32.mrf.mxu0
      %1011 = vmatprep.mubr.bf16.mxu0 0
      %1012 = vmatmul.mubr.bf16.gmra.mxu0 %v792
      %v1013 = vpop.f32.mrf.mxu0
      %v1014 = vadd.f32 %v833, %v1013
      %v1015 = vpop.f32.mrf.mxu0
      %v1016 = vpop.f32.mrf.mxu0
      %v1017 = vadd.f32 %v833, %v1016
      %v1018 = vpop.f32.mrf.mxu0
      %1019 = vmatprep.mubr.bf16.mxu0 0
      %1020 = vmatmul.mubr.bf16.gmra.mxu0 %v793
      %v1021 = vpop.f32.mrf.mxu0
      %v1022 = vadd.f32 %v833, %v1021
      %v1023 = vpop.f32.mrf.mxu0
      %v1024 = vpop.f32.mrf.mxu0
      %v1025 = vadd.f32 %v833, %v1024
      %v1026 = vpop.f32.mrf.mxu0
      %1027 = vmatprep.mubr.bf16.mxu0 0
      %1028 = vmatmul.mubr.bf16.gmra.mxu0 %v794
      %v1029 = vpop.f32.mrf.mxu0
      %v1030 = vadd.f32 %v833, %v1029
      %v1031 = vpop.f32.mrf.mxu0
      %v1032 = vpop.f32.mrf.mxu0
      %v1033 = vadd.f32 %v833, %v1032
      %v1034 = vpop.f32.mrf.mxu0
      %1035 = vmatprep.mubr.bf16.mxu0 0
      %1036 = vmatmul.mubr.bf16.gmra.mxu0 %v795
      %v1037 = vpop.f32.mrf.mxu0
      %v1038 = vadd.f32 %v833, %v1037
      %v1039 = vpop.f32.mrf.mxu0
      %v1040 = vpop.f32.mrf.mxu0
      %v1041 = vadd.f32 %v833, %v1040
      %v1042 = vpop.f32.mrf.mxu0
      %1043 = vmatprep.mubr.bf16.mxu0 0
      %1044 = vmatmul.mubr.bf16.gmra.mxu0 %v796
      %v1045 = vpop.f32.mrf.mxu0
      %v1046 = vadd.f32 %v833, %v1045
      %v1047 = vpop.f32.mrf.mxu0
      %v1048 = vpop.f32.mrf.mxu0
      %v1049 = vadd.f32 %v833, %v1048
      %v1050 = vpop.f32.mrf.mxu0
      %1051 = vmatprep.mubr.bf16.mxu0 0
      %1052 = vmatmul.mubr.bf16.gmra.mxu0 %v797
      %v1053 = vpop.f32.mrf.mxu0
      %v1054 = vadd.f32 %v833, %v1053
      %v1055 = vpop.f32.mrf.mxu0
      %v1056 = vpop.f32.mrf.mxu0
      %v1057 = vadd.f32 %v833, %v1056
      %v1058 = vpop.f32.mrf.mxu0
      %1059 = vmatprep.mubr.bf16.mxu0 0
      %1060 = vmatmul.mubr.bf16.gmra.mxu0 %v798
      %v1061 = vpop.f32.mrf.mxu0
      %v1062 = vadd.f32 %v833, %v1061
      %v1063 = vpop.f32.mrf.mxu0
      %v1064 = vpop.f32.mrf.mxu0
      %v1065 = vadd.f32 %v833, %v1064
      %v1066 = vpop.f32.mrf.mxu0
      %1067 = vmatprep.mubr.bf16.mxu0 0
      %1068 = vmatmul.mubr.bf16.gmra.mxu0 %v799
      %v1069 = vpop.f32.mrf.mxu0
      %v1070 = vadd.f32 %v833, %v1069
      %v1071 = vpop.f32.mrf.mxu0
      %v1072 = vpop.f32.mrf.mxu0
      %v1073 = vadd.f32 %v833, %v1072
      %v1074 = vpop.f32.mrf.mxu0
      %1075 = vmatprep.mubr.bf16.mxu0 0
      %1076 = vmatmul.mubr.bf16.gmra.mxu0 %v800
      %v1077 = vpop.f32.mrf.mxu0
      %v1078 = vadd.f32 %v833, %v1077
      %v1079 = vpop.f32.mrf.mxu0
      %v1080 = vpop.f32.mrf.mxu0
      %v1081 = vadd.f32 %v833, %v1080
      %v1082 = vpop.f32.mrf.mxu0
      %1083 = vmatprep.mubr.bf16.mxu0 0
      %1084 = vmatmul.mubr.bf16.gmra.mxu0 %v801
      %v1085 = vpop.f32.mrf.mxu0
      %v1086 = vadd.f32 %v833, %v1085
      %v1087 = vpop.f32.mrf.mxu0
      %v1088 = vpop.f32.mrf.mxu0
      %v1089 = vadd.f32 %v833, %v1088
      %v1090 = vpop.f32.mrf.mxu0
      %1091 = vmatprep.mubr.bf16.mxu0 0
      %1092 = vmatmul.mubr.bf16.gmra.mxu0 %v802
      %v1093 = vpop.f32.mrf.mxu0
      %v1094 = vadd.f32 %v833, %v1093
      %v1095 = vpop.f32.mrf.mxu0
      %v1096 = vpop.f32.mrf.mxu0
      %v1097 = vadd.f32 %v833, %v1096
      %v1098 = vpop.f32.mrf.mxu0
      %1099 = vmatprep.mubr.bf16.mxu0 0
      %1100 = vmatmul.mubr.bf16.gmra.mxu0 %v803
      %v1101 = vpop.f32.mrf.mxu0
      %v1102 = vadd.f32 %v833, %v1101
      %v1103 = vpop.f32.mrf.mxu0
      %v1104 = vpop.f32.mrf.mxu0
      %v1105 = vadd.f32 %v833, %v1104
      %v1106 = vpop.f32.mrf.mxu0
      %1107 = vmatprep.mubr.bf16.mxu0 0
      %1108 = vmatmul.mubr.bf16.gmra.mxu0 %v804
      %v1109 = vpop.f32.mrf.mxu0
      %v1110 = vadd.f32 %v833, %v1109
      %v1111 = vpop.f32.mrf.mxu0
      %v1112 = vpop.f32.mrf.mxu0
      %v1113 = vadd.f32 %v833, %v1112
      %v1114 = vpop.f32.mrf.mxu0
      %1115 = vmatprep.mubr.bf16.mxu0 0
      %1116 = vmatmul.mubr.bf16.gmra.mxu0 %v805
      %v1117 = vpop.f32.mrf.mxu0
      %v1118 = vadd.f32 %v833, %v1117
      %v1119 = vpop.f32.mrf.mxu0
      %v1120 = vpop.f32.mrf.mxu0
      %v1121 = vadd.f32 %v833, %v1120
      %v1122 = vpop.f32.mrf.mxu0
      %1123 = vmatprep.mubr.bf16.mxu0 0
      %1124 = vmatmul.mubr.bf16.gmra.mxu0 %v806
      %v1125 = vpop.f32.mrf.mxu0
      %v1126 = vadd.f32 %v833, %v1125
      %v1127 = vpop.f32.mrf.mxu0
      %v1128 = vpop.f32.mrf.mxu0
      %v1129 = vadd.f32 %v833, %v1128
      %v1130 = vpop.f32.mrf.mxu0
      %1131 = vmatprep.mubr.bf16.mxu0 0
      %1132 = vmatmul.mubr.bf16.gmra.mxu0 %v807
      %v1133 = vpop.f32.mrf.mxu0
      %v1134 = vadd.f32 %v833, %v1133
      %v1135 = vpop.f32.mrf.mxu0
      %v1136 = vpop.f32.mrf.mxu0
      %v1137 = vadd.f32 %v833, %v1136
      %v1138 = vpop.f32.mrf.mxu0
      %1139 = vmatprep.mubr.bf16.mxu0 0
      %1140 = vmatmul.mubr.bf16.gmra.mxu0 %v808
      %v1141 = vpop.f32.mrf.mxu0
      %v1142 = vadd.f32 %v833, %v1141
      %v1143 = vpop.f32.mrf.mxu0
      %v1144 = vpop.f32.mrf.mxu0
      %v1145 = vadd.f32 %v833, %v1144
      %v1146 = vpop.f32.mrf.mxu0
      %1147 = vmatprep.mubr.bf16.mxu0 0
      %1148 = vmatmul.mubr.bf16.gmra.mxu0 %v809
      %v1149 = vpop.f32.mrf.mxu0
      %v1150 = vadd.f32 %v833, %v1149
      %v1151 = vpop.f32.mrf.mxu0
      %v1152 = vpop.f32.mrf.mxu0
      %v1153 = vadd.f32 %v833, %v1152
      %v1154 = vpop.f32.mrf.mxu0
      %1155 = vmatprep.mubr.bf16.mxu0 0
      %1156 = vmatmul.mubr.bf16.gmra.mxu0 %v810
      %v1157 = vpop.f32.mrf.mxu0
      %v1158 = vadd.f32 %v833, %v1157
      %v1159 = vpop.f32.mrf.mxu0
      %v1160 = vpop.f32.mrf.mxu0
      %v1161 = vadd.f32 %v833, %v1160
      %v1162 = vpop.f32.mrf.mxu0
      %1163 = vmatprep.mubr.bf16.mxu0 0
      %1164 = vmatmul.mubr.bf16.gmra.mxu0 %v811
      %v1165 = vpop.f32.mrf.mxu0
      %v1166 = vadd.f32 %v833, %v1165
      %v1167 = vpop.f32.mrf.mxu0
      %v1168 = vpop.f32.mrf.mxu0
      %v1169 = vadd.f32 %v833, %v1168
      %v1170 = vpop.f32.mrf.mxu0
      %1171 = vdwg.mxu0
      %v1172 = vpack.c.bf16 %v921, %v918
      %v1173 = vpack.c.bf16 %v929, %v926
      %v1174 = vpack.c.bf16 %v937, %v934
      %v1175 = vpack.c.bf16 %v945, %v942
      %v1176 = vpack.c.bf16 %v953, %v950
      %v1177 = vpack.c.bf16 %v961, %v958
      %v1178 = vpack.c.bf16 %v969, %v966
      %v1179 = vpack.c.bf16 %v977, %v974
      %v1180 = vpack.c.bf16 %v985, %v982
      %v1181 = vpack.c.bf16 %v993, %v990
      %v1182 = vpack.c.bf16 %v1001, %v998
      %v1183 = vpack.c.bf16 %v1009, %v1006
      %v1184 = vpack.c.bf16 %v1017, %v1014
      %v1185 = vpack.c.bf16 %v1025, %v1022
      %v1186 = vpack.c.bf16 %v1033, %v1030
      %v1187 = vpack.c.bf16 %v1041, %v1038
      %v1188 = vpack.c.bf16 %v1049, %v1046
      %v1189 = vpack.c.bf16 %v1057, %v1054
      %v1190 = vpack.c.bf16 %v1065, %v1062
      %v1191 = vpack.c.bf16 %v1073, %v1070
      %v1192 = vpack.c.bf16 %v1081, %v1078
      %v1193 = vpack.c.bf16 %v1089, %v1086
      %v1194 = vpack.c.bf16 %v1097, %v1094
      %v1195 = vpack.c.bf16 %v1105, %v1102
      %v1196 = vpack.c.bf16 %v1113, %v1110
      %v1197 = vpack.c.bf16 %v1121, %v1118
      %v1198 = vpack.c.bf16 %v1129, %v1126
      %v1199 = vpack.c.bf16 %v1137, %v1134
      %v1200 = vpack.c.bf16 %v1145, %v1142
      %v1201 = vpack.c.bf16 %v1153, %v1150
      %v1202 = vpack.c.bf16 %v1161, %v1158
      %v1203 = vpack.c.bf16 %v1169, %v1166
      %v1204 = vld [vmem:[%s3] sm:$0xf]
      %v1205 = vld [vmem:[%s3 + $0x4] sm:$0xf]
      %v1206 = vld [vmem:[%s3 + $0x8] sm:$0xf]
      %v1207 = vld [vmem:[%s3 + $0xc] sm:$0xf]
      %v1208 = vld [vmem:[%s3 + $0x10] sm:$0xf]
      %v1209 = vld [vmem:[%s3 + $0x14] sm:$0xf]
      %v1210 = vld [vmem:[%s3 + $0x18] sm:$0xf]
      %v1211 = vld [vmem:[%s3 + $0x1c] sm:$0xf]
      %v1212 = vld [vmem:[%s3 + $0x20] sm:$0xf]
      %v1213 = vld [vmem:[%s3 + $0x24] sm:$0xf]
      %v1214 = vld [vmem:[%s3 + $0x28] sm:$0xf]
      %v1215 = vld [vmem:[%s3 + $0x2c] sm:$0xf]
      %v1216 = vld [vmem:[%s3 + $0x30] sm:$0xf]
      %v1217 = vld [vmem:[%s3 + $0x34] sm:$0xf]
      %v1218 = vld [vmem:[%s3 + $0x38] sm:$0xf]
      %v1219 = vld [vmem:[%s3 + $0x3c] sm:$0xf]
      %v1220 = vld [vmem:[%s6] sm:$0x1]
      %v1222 = vlaneseq
      %v1223 = vshrl.u32 %v1222, 7
      %v1224 = vsub.s32 0, %v1223
      %v1225 = vrot.slane %v1220, %v1224
      %v1243 = vunpack.c.l.b16 %v1204
      %v1244 = vunpack.c.l.b16 %v1205
      %v1245 = vunpack.c.l.b16 %v1206
      %v1246 = vunpack.c.l.b16 %v1207
      %v1247 = vunpack.c.l.b16 %v1208
      %v1248 = vunpack.c.l.b16 %v1209
      %v1249 = vunpack.c.l.b16 %v1210
      %v1250 = vunpack.c.l.b16 %v1211
      %v1251 = vunpack.c.l.b16 %v1212
      %v1252 = vunpack.c.l.b16 %v1213
      %v1253 = vunpack.c.l.b16 %v1214
      %v1254 = vunpack.c.l.b16 %v1215
      %v1255 = vunpack.c.l.b16 %v1216
      %v1256 = vunpack.c.l.b16 %v1217
      %v1257 = vunpack.c.l.b16 %v1218
      %v1258 = vunpack.c.l.b16 %v1219
      %v1259 = vpack.c.b16 %v1244, %v1243
      %v1260 = vpack.c.b16 %v1246, %v1245
      %v1261 = vpack.c.b16 %v1248, %v1247
      %v1262 = vpack.c.b16 %v1250, %v1249
      %v1263 = vpack.c.b16 %v1252, %v1251
      %v1264 = vpack.c.b16 %v1254, %v1253
      %v1265 = vpack.c.b16 %v1256, %v1255
      %v1266 = vpack.c.b16 %v1258, %v1257
      %1275 = vmatprep.subr.bf16.mxu0 0
      %1276 = vmatpush1.bf16.msra.mxu0 %v1266
      %1277 = vmatprep.subr.bf16.mxu0 0
      %1278 = vmatpush1.bf16.msra.mxu0 %v1265
      %1279 = vmatprep.subr.bf16.mxu0 0
      %1280 = vmatpush1.bf16.msra.mxu0 %v1264
      %1281 = vmatprep.subr.bf16.mxu0 0
      %1282 = vmatpush1.bf16.msra.mxu0 %v1263
      %1283 = vmatprep.subr.bf16.mxu0 0
      %1284 = vmatpush1.bf16.msra.mxu0 %v1262
      %1285 = vmatprep.subr.bf16.mxu0 0
      %1286 = vmatpush1.bf16.msra.mxu0 %v1261
      %1287 = vmatprep.subr.bf16.mxu0 0
      %1288 = vmatpush1.bf16.msra.mxu0 %v1260
      %1289 = vmatprep.subr.bf16.mxu0 0
      %1290 = vmatpush1.bf16.msra.mxu0 %v1259
      %1291 = vmatprep.subr.bf16.mxu0 0
      %1292 = vmatpush2.bf16.msra.mxu0 0
      %1293 = vmatprep.subr.bf16.mxu0 0
      %1294 = vmatpush2.bf16.msra.mxu0 0
      %1295 = vmatprep.subr.bf16.mxu0 0
      %1296 = vmatpush2.bf16.msra.mxu0 0
      %1297 = vmatprep.subr.bf16.mxu0 0
      %1298 = vmatpush2.bf16.msra.mxu0 0
      %1299 = vmatprep.subr.bf16.mxu0 0
      %1300 = vmatpush2.bf16.msra.mxu0 0
      %1301 = vmatprep.subr.bf16.mxu0 0
      %1302 = vmatpush2.bf16.msra.mxu0 0
      %1303 = vmatprep.subr.bf16.mxu0 0
      %1304 = vmatpush2.bf16.msra.mxu0 0
      %1305 = vmatprep.subr.bf16.mxu0 0
      %1306 = vmatpush2.bf16.msra.mxu0 0
      %1307 = vmatprep.mubr.bf16.mxu0 0
      %1308 = vmatmul.mubr.bf16.gmra.mxu0 %v1172
      %v1309 = vpop.f32.mrf.mxu0
      %v1310 = vadd.f32 %v1225, %v1309
      %v1311 = vpop.f32.mrf.mxu0
      %v1312 = vpop.f32.mrf.mxu0
      %v1313 = vadd.f32 %v1225, %v1312
      %v1314 = vpop.f32.mrf.mxu0
      %1315 = vmatprep.mubr.bf16.mxu0 0
      %1316 = vmatmul.mubr.bf16.gmra.mxu0 %v1173
      %v1317 = vpop.f32.mrf.mxu0
      %v1318 = vadd.f32 %v1225, %v1317
      %v1319 = vpop.f32.mrf.mxu0
      %v1320 = vpop.f32.mrf.mxu0
      %v1321 = vadd.f32 %v1225, %v1320
      %v1322 = vpop.f32.mrf.mxu0
      %1323 = vmatprep.mubr.bf16.mxu0 0
      %1324 = vmatmul.mubr.bf16.gmra.mxu0 %v1174
      %v1325 = vpop.f32.mrf.mxu0
      %v1326 = vadd.f32 %v1225, %v1325
      %v1327 = vpop.f32.mrf.mxu0
      %v1328 = vpop.f32.mrf.mxu0
      %v1329 = vadd.f32 %v1225, %v1328
      %v1330 = vpop.f32.mrf.mxu0
      %1331 = vmatprep.mubr.bf16.mxu0 0
      %1332 = vmatmul.mubr.bf16.gmra.mxu0 %v1175
      %v1333 = vpop.f32.mrf.mxu0
      %v1334 = vadd.f32 %v1225, %v1333
      %v1335 = vpop.f32.mrf.mxu0
      %v1336 = vpop.f32.mrf.mxu0
      %v1337 = vadd.f32 %v1225, %v1336
      %v1338 = vpop.f32.mrf.mxu0
      %1339 = vmatprep.mubr.bf16.mxu0 0
      %1340 = vmatmul.mubr.bf16.gmra.mxu0 %v1176
      %v1341 = vpop.f32.mrf.mxu0
      %v1342 = vadd.f32 %v1225, %v1341
      %v1343 = vpop.f32.mrf.mxu0
      %v1344 = vpop.f32.mrf.mxu0
      %v1345 = vadd.f32 %v1225, %v1344
      %v1346 = vpop.f32.mrf.mxu0
      %1347 = vmatprep.mubr.bf16.mxu0 0
      %1348 = vmatmul.mubr.bf16.gmra.mxu0 %v1177
      %v1349 = vpop.f32.mrf.mxu0
      %v1350 = vadd.f32 %v1225, %v1349
      %v1351 = vpop.f32.mrf.mxu0
      %v1352 = vpop.f32.mrf.mxu0
      %v1353 = vadd.f32 %v1225, %v1352
      %v1354 = vpop.f32.mrf.mxu0
      %1355 = vmatprep.mubr.bf16.mxu0 0
      %1356 = vmatmul.mubr.bf16.gmra.mxu0 %v1178
      %v1357 = vpop.f32.mrf.mxu0
      %v1358 = vadd.f32 %v1225, %v1357
      %v1359 = vpop.f32.mrf.mxu0
      %v1360 = vpop.f32.mrf.mxu0
      %v1361 = vadd.f32 %v1225, %v1360
      %v1362 = vpop.f32.mrf.mxu0
      %1363 = vmatprep.mubr.bf16.mxu0 0
      %1364 = vmatmul.mubr.bf16.gmra.mxu0 %v1179
      %v1365 = vpop.f32.mrf.mxu0
      %v1366 = vadd.f32 %v1225, %v1365
      %v1367 = vpop.f32.mrf.mxu0
      %v1368 = vpop.f32.mrf.mxu0
      %v1369 = vadd.f32 %v1225, %v1368
      %v1370 = vpop.f32.mrf.mxu0
      %1371 = vmatprep.mubr.bf16.mxu0 0
      %1372 = vmatmul.mubr.bf16.gmra.mxu0 %v1180
      %v1373 = vpop.f32.mrf.mxu0
      %v1374 = vadd.f32 %v1225, %v1373
      %v1375 = vpop.f32.mrf.mxu0
      %v1376 = vpop.f32.mrf.mxu0
      %v1377 = vadd.f32 %v1225, %v1376
      %v1378 = vpop.f32.mrf.mxu0
      %1379 = vmatprep.mubr.bf16.mxu0 0
      %1380 = vmatmul.mubr.bf16.gmra.mxu0 %v1181
      %v1381 = vpop.f32.mrf.mxu0
      %v1382 = vadd.f32 %v1225, %v1381
      %v1383 = vpop.f32.mrf.mxu0
      %v1384 = vpop.f32.mrf.mxu0
      %v1385 = vadd.f32 %v1225, %v1384
      %v1386 = vpop.f32.mrf.mxu0
      %1387 = vmatprep.mubr.bf16.mxu0 0
      %1388 = vmatmul.mubr.bf16.gmra.mxu0 %v1182
      %v1389 = vpop.f32.mrf.mxu0
      %v1390 = vadd.f32 %v1225, %v1389
      %v1391 = vpop.f32.mrf.mxu0
      %v1392 = vpop.f32.mrf.mxu0
      %v1393 = vadd.f32 %v1225, %v1392
      %v1394 = vpop.f32.mrf.mxu0
      %1395 = vmatprep.mubr.bf16.mxu0 0
      %1396 = vmatmul.mubr.bf16.gmra.mxu0 %v1183
      %v1397 = vpop.f32.mrf.mxu0
      %v1398 = vadd.f32 %v1225, %v1397
      %v1399 = vpop.f32.mrf.mxu0
      %v1400 = vpop.f32.mrf.mxu0
      %v1401 = vadd.f32 %v1225, %v1400
      %v1402 = vpop.f32.mrf.mxu0
      %1403 = vmatprep.mubr.bf16.mxu0 0
      %1404 = vmatmul.mubr.bf16.gmra.mxu0 %v1184
      %v1405 = vpop.f32.mrf.mxu0
      %v1406 = vadd.f32 %v1225, %v1405
      %v1407 = vpop.f32.mrf.mxu0
      %v1408 = vpop.f32.mrf.mxu0
      %v1409 = vadd.f32 %v1225, %v1408
      %v1410 = vpop.f32.mrf.mxu0
      %1411 = vmatprep.mubr.bf16.mxu0 0
      %1412 = vmatmul.mubr.bf16.gmra.mxu0 %v1185
      %v1413 = vpop.f32.mrf.mxu0
      %v1414 = vadd.f32 %v1225, %v1413
      %v1415 = vpop.f32.mrf.mxu0
      %v1416 = vpop.f32.mrf.mxu0
      %v1417 = vadd.f32 %v1225, %v1416
      %v1418 = vpop.f32.mrf.mxu0
      %1419 = vmatprep.mubr.bf16.mxu0 0
      %1420 = vmatmul.mubr.bf16.gmra.mxu0 %v1186
      %v1421 = vpop.f32.mrf.mxu0
      %v1422 = vadd.f32 %v1225, %v1421
      %v1423 = vpop.f32.mrf.mxu0
      %v1424 = vpop.f32.mrf.mxu0
      %v1425 = vadd.f32 %v1225, %v1424
      %v1426 = vpop.f32.mrf.mxu0
      %1427 = vmatprep.mubr.bf16.mxu0 0
      %1428 = vmatmul.mubr.bf16.gmra.mxu0 %v1187
      %v1429 = vpop.f32.mrf.mxu0
      %v1430 = vadd.f32 %v1225, %v1429
      %v1431 = vpop.f32.mrf.mxu0
      %v1432 = vpop.f32.mrf.mxu0
      %v1433 = vadd.f32 %v1225, %v1432
      %v1434 = vpop.f32.mrf.mxu0
      %1435 = vmatprep.mubr.bf16.mxu0 0
      %1436 = vmatmul.mubr.bf16.gmra.mxu0 %v1188
      %v1437 = vpop.f32.mrf.mxu0
      %v1438 = vadd.f32 %v1225, %v1437
      %v1439 = vpop.f32.mrf.mxu0
      %v1440 = vpop.f32.mrf.mxu0
      %v1441 = vadd.f32 %v1225, %v1440
      %v1442 = vpop.f32.mrf.mxu0
      %1443 = vmatprep.mubr.bf16.mxu0 0
      %1444 = vmatmul.mubr.bf16.gmra.mxu0 %v1189
      %v1445 = vpop.f32.mrf.mxu0
      %v1446 = vadd.f32 %v1225, %v1445
      %v1447 = vpop.f32.mrf.mxu0
      %v1448 = vpop.f32.mrf.mxu0
      %v1449 = vadd.f32 %v1225, %v1448
      %v1450 = vpop.f32.mrf.mxu0
      %1451 = vmatprep.mubr.bf16.mxu0 0
      %1452 = vmatmul.mubr.bf16.gmra.mxu0 %v1190
      %v1453 = vpop.f32.mrf.mxu0
      %v1454 = vadd.f32 %v1225, %v1453
      %v1455 = vpop.f32.mrf.mxu0
      %v1456 = vpop.f32.mrf.mxu0
      %v1457 = vadd.f32 %v1225, %v1456
      %v1458 = vpop.f32.mrf.mxu0
      %1459 = vmatprep.mubr.bf16.mxu0 0
      %1460 = vmatmul.mubr.bf16.gmra.mxu0 %v1191
      %v1461 = vpop.f32.mrf.mxu0
      %v1462 = vadd.f32 %v1225, %v1461
      %v1463 = vpop.f32.mrf.mxu0
      %v1464 = vpop.f32.mrf.mxu0
      %v1465 = vadd.f32 %v1225, %v1464
      %v1466 = vpop.f32.mrf.mxu0
      %1467 = vmatprep.mubr.bf16.mxu0 0
      %1468 = vmatmul.mubr.bf16.gmra.mxu0 %v1192
      %v1469 = vpop.f32.mrf.mxu0
      %v1470 = vadd.f32 %v1225, %v1469
      %v1471 = vpop.f32.mrf.mxu0
      %v1472 = vpop.f32.mrf.mxu0
      %v1473 = vadd.f32 %v1225, %v1472
      %v1474 = vpop.f32.mrf.mxu0
      %1475 = vmatprep.mubr.bf16.mxu0 0
      %1476 = vmatmul.mubr.bf16.gmra.mxu0 %v1193
      %v1477 = vpop.f32.mrf.mxu0
      %v1478 = vadd.f32 %v1225, %v1477
      %v1479 = vpop.f32.mrf.mxu0
      %v1480 = vpop.f32.mrf.mxu0
      %v1481 = vadd.f32 %v1225, %v1480
      %v1482 = vpop.f32.mrf.mxu0
      %1483 = vmatprep.mubr.bf16.mxu0 0
      %1484 = vmatmul.mubr.bf16.gmra.mxu0 %v1194
      %v1485 = vpop.f32.mrf.mxu0
      %v1486 = vadd.f32 %v1225, %v1485
      %v1487 = vpop.f32.mrf.mxu0
      %v1488 = vpop.f32.mrf.mxu0
      %v1489 = vadd.f32 %v1225, %v1488
      %v1490 = vpop.f32.mrf.mxu0
      %1491 = vmatprep.mubr.bf16.mxu0 0
      %1492 = vmatmul.mubr.bf16.gmra.mxu0 %v1195
      %v1493 = vpop.f32.mrf.mxu0
      %v1494 = vadd.f32 %v1225, %v1493
      %v1495 = vpop.f32.mrf.mxu0
      %v1496 = vpop.f32.mrf.mxu0
      %v1497 = vadd.f32 %v1225, %v1496
      %v1498 = vpop.f32.mrf.mxu0
      %1499 = vmatprep.mubr.bf16.mxu0 0
      %1500 = vmatmul.mubr.bf16.gmra.mxu0 %v1196
      %v1501 = vpop.f32.mrf.mxu0
      %v1502 = vadd.f32 %v1225, %v1501
      %v1503 = vpop.f32.mrf.mxu0
      %v1504 = vpop.f32.mrf.mxu0
      %v1505 = vadd.f32 %v1225, %v1504
      %v1506 = vpop.f32.mrf.mxu0
      %1507 = vmatprep.mubr.bf16.mxu0 0
      %1508 = vmatmul.mubr.bf16.gmra.mxu0 %v1197
      %v1509 = vpop.f32.mrf.mxu0
      %v1510 = vadd.f32 %v1225, %v1509
      %v1511 = vpop.f32.mrf.mxu0
      %v1512 = vpop.f32.mrf.mxu0
      %v1513 = vadd.f32 %v1225, %v1512
      %v1514 = vpop.f32.mrf.mxu0
      %1515 = vmatprep.mubr.bf16.mxu0 0
      %1516 = vmatmul.mubr.bf16.gmra.mxu0 %v1198
      %v1517 = vpop.f32.mrf.mxu0
      %v1518 = vadd.f32 %v1225, %v1517
      %v1519 = vpop.f32.mrf.mxu0
      %v1520 = vpop.f32.mrf.mxu0
      %v1521 = vadd.f32 %v1225, %v1520
      %v1522 = vpop.f32.mrf.mxu0
      %1523 = vmatprep.mubr.bf16.mxu0 0
      %1524 = vmatmul.mubr.bf16.gmra.mxu0 %v1199
      %v1525 = vpop.f32.mrf.mxu0
      %v1526 = vadd.f32 %v1225, %v1525
      %v1527 = vpop.f32.mrf.mxu0
      %v1528 = vpop.f32.mrf.mxu0
      %v1529 = vadd.f32 %v1225, %v1528
      %v1530 = vpop.f32.mrf.mxu0
      %1531 = vmatprep.mubr.bf16.mxu0 0
      %1532 = vmatmul.mubr.bf16.gmra.mxu0 %v1200
      %v1533 = vpop.f32.mrf.mxu0
      %v1534 = vadd.f32 %v1225, %v1533
      %v1535 = vpop.f32.mrf.mxu0
      %v1536 = vpop.f32.mrf.mxu0
      %v1537 = vadd.f32 %v1225, %v1536
      %v1538 = vpop.f32.mrf.mxu0
      %1539 = vmatprep.mubr.bf16.mxu0 0
      %1540 = vmatmul.mubr.bf16.gmra.mxu0 %v1201
      %v1541 = vpop.f32.mrf.mxu0
      %v1542 = vadd.f32 %v1225, %v1541
      %v1543 = vpop.f32.mrf.mxu0
      %v1544 = vpop.f32.mrf.mxu0
      %v1545 = vadd.f32 %v1225, %v1544
      %v1546 = vpop.f32.mrf.mxu0
      %1547 = vmatprep.mubr.bf16.mxu0 0
      %1548 = vmatmul.mubr.bf16.gmra.mxu0 %v1202
      %v1549 = vpop.f32.mrf.mxu0
      %v1550 = vadd.f32 %v1225, %v1549
      %v1551 = vpop.f32.mrf.mxu0
      %v1552 = vpop.f32.mrf.mxu0
      %v1553 = vadd.f32 %v1225, %v1552
      %v1554 = vpop.f32.mrf.mxu0
      %1555 = vmatprep.mubr.bf16.mxu0 0
      %1556 = vmatmul.mubr.bf16.gmra.mxu0 %v1203
      %v1557 = vpop.f32.mrf.mxu0
      %v1558 = vadd.f32 %v1225, %v1557
      %v1559 = vpop.f32.mrf.mxu0
      %v1560 = vpop.f32.mrf.mxu0
      %v1561 = vadd.f32 %v1225, %v1560
      %v1562 = vpop.f32.mrf.mxu0
      %1563 = vdwg.mxu0
      %1564 = vst [vmem:[%s280] sm:$0xff] %v1310
      %1565 = vst [vmem:[%s280 + $0x8] sm:$0xff] %v1313
      %1566 = vst [vmem:[%s280 + $0x10] sm:$0xff] %v1318
      %1567 = vst [vmem:[%s280 + $0x18] sm:$0xff] %v1321
      %1568 = vst [vmem:[%s280 + $0x20] sm:$0xff] %v1326
      %1569 = vst [vmem:[%s280 + $0x28] sm:$0xff] %v1329
      %1570 = vst [vmem:[%s280 + $0x30] sm:$0xff] %v1334
      %1571 = vst [vmem:[%s280 + $0x38] sm:$0xff] %v1337
      %1572 = vst [vmem:[%s280 + $0x40] sm:$0xff] %v1342
      %1573 = vst [vmem:[%s280 + $0x48] sm:$0xff] %v1345
      %1574 = vst [vmem:[%s280 + $0x50] sm:$0xff] %v1350
      %1575 = vst [vmem:[%s280 + $0x58] sm:$0xff] %v1353
      %1576 = vst [vmem:[%s280 + $0x60] sm:$0xff] %v1358
      %1577 = vst [vmem:[%s280 + $0x68] sm:$0xff] %v1361
      %1578 = vst [vmem:[%s280 + $0x70] sm:$0xff] %v1366
      %1579 = vst [vmem:[%s280 + $0x78] sm:$0xff] %v1369
      %1580 = vst [vmem:[%s280 + $0x80] sm:$0xff] %v1374
      %1581 = vst [vmem:[%s280 + $0x88] sm:$0xff] %v1377
      %1582 = vst [vmem:[%s280 + $0x90] sm:$0xff] %v1382
      %1583 = vst [vmem:[%s280 + $0x98] sm:$0xff] %v1385
      %1584 = vst [vmem:[%s280 + $0xa0] sm:$0xff] %v1390
      %1585 = vst [vmem:[%s280 + $0xa8] sm:$0xff] %v1393
      %1586 = vst [vmem:[%s280 + $0xb0] sm:$0xff] %v1398
      %1587 = vst [vmem:[%s280 + $0xb8] sm:$0xff] %v1401
      %1588 = vst [vmem:[%s280 + $0xc0] sm:$0xff] %v1406
      %1589 = vst [vmem:[%s280 + $0xc8] sm:$0xff] %v1409
      %1590 = vst [vmem:[%s280 + $0xd0] sm:$0xff] %v1414
      %1591 = vst [vmem:[%s280 + $0xd8] sm:$0xff] %v1417
      %1592 = vst [vmem:[%s280 + $0xe0] sm:$0xff] %v1422
      %1593 = vst [vmem:[%s280 + $0xe8] sm:$0xff] %v1425
      %1594 = vst [vmem:[%s280 + $0xf0] sm:$0xff] %v1430
      %1595 = vst [vmem:[%s280 + $0xf8] sm:$0xff] %v1433
      %1596 = vst [vmem:[%s280 + $0x100] sm:$0xff] %v1438
      %1597 = vst [vmem:[%s280 + $0x108] sm:$0xff] %v1441
      %1598 = vst [vmem:[%s280 + $0x110] sm:$0xff] %v1446
      %1599 = vst [vmem:[%s280 + $0x118] sm:$0xff] %v1449
      %1600 = vst [vmem:[%s280 + $0x120] sm:$0xff] %v1454
      %1601 = vst [vmem:[%s280 + $0x128] sm:$0xff] %v1457
      %1602 = vst [vmem:[%s280 + $0x130] sm:$0xff] %v1462
      %1603 = vst [vmem:[%s280 + $0x138] sm:$0xff] %v1465
      %1604 = vst [vmem:[%s280 + $0x140] sm:$0xff] %v1470
      %1605 = vst [vmem:[%s280 + $0x148] sm:$0xff] %v1473
      %1606 = vst [vmem:[%s280 + $0x150] sm:$0xff] %v1478
      %1607 = vst [vmem:[%s280 + $0x158] sm:$0xff] %v1481
      %1608 = vst [vmem:[%s280 + $0x160] sm:$0xff] %v1486
      %1609 = vst [vmem:[%s280 + $0x168] sm:$0xff] %v1489
      %1610 = vst [vmem:[%s280 + $0x170] sm:$0xff] %v1494
      %1611 = vst [vmem:[%s280 + $0x178] sm:$0xff] %v1497
      %1612 = vst [vmem:[%s280 + $0x180] sm:$0xff] %v1502
      %1613 = vst [vmem:[%s280 + $0x188] sm:$0xff] %v1505
      %1614 = vst [vmem:[%s280 + $0x190] sm:$0xff] %v1510
      %1615 = vst [vmem:[%s280 + $0x198] sm:$0xff] %v1513
      %1616 = vst [vmem:[%s280 + $0x1a0] sm:$0xff] %v1518
      %1617 = vst [vmem:[%s280 + $0x1a8] sm:$0xff] %v1521
      %1618 = vst [vmem:[%s280 + $0x1b0] sm:$0xff] %v1526
      %1619 = vst [vmem:[%s280 + $0x1b8] sm:$0xff] %v1529
      %1620 = vst [vmem:[%s280 + $0x1c0] sm:$0xff] %v1534
      %1621 = vst [vmem:[%s280 + $0x1c8] sm:$0xff] %v1537
      %1622 = vst [vmem:[%s280 + $0x1d0] sm:$0xff] %v1542
      %1623 = vst [vmem:[%s280 + $0x1d8] sm:$0xff] %v1545
      %1624 = vst [vmem:[%s280 + $0x1e0] sm:$0xff] %v1550
      %1625 = vst [vmem:[%s280 + $0x1e8] sm:$0xff] %v1553
      %1626 = vst [vmem:[%s280 + $0x1f0] sm:$0xff] %v1558
      %1627 = vst [vmem:[%s280 + $0x1f8] sm:$0xff] %v1561
      %s1628 = smul.u32 64, %s18
      %p1629 = scmp.lt.s32.totalorder %s1628, 127
      %s1630 = scalar_select %p1629, %s1628, 127
      %s1631 = smul.addr %s1630, 8
      %s1632 = scalar_lea.vmem %s7, %s1631
      // Predicated region
      $region49: #{deep_made_forward.1} parent=47 // pred_check
        %p1633 = pneg %p188
      $region50: #{deep_made_forward.1} parent=47 // pred_check_branch
        %1635 = sbr.rel (%p1633) target = $region52
      $region51: #{deep_made_forward.1} parent=47 // pred_region
        %s1636 = smul.u32 64, %s18
      $region52: #{deep_made_forward.1} parent=47 // pred_fallthru
        _
    $region48: #{deep_made_forward.1} parent=5 // pred_fallthru
      _
    %p1637 = scmp.le.s32.totalorder 2, %s13
    // Predicated region
    $region53: #{deep_made_forward.1} parent=5 // pred_check
      %p1638 = pneg %p1637
    $region54: #{deep_made_forward.1} parent=5 // pred_check_branch
      %1640 = sbr.rel (%p1638) target = $region56
    $region55: #{deep_made_forward.1} parent=5 // pred_region
      %s1641 = ssub.s32 %s13, 2
      // Predicated region
      $region57: #{deep_made_forward.1} parent=55 // pred_check
        %p1642 = pneg %p194
      $region58: #{deep_made_forward.1} parent=55 // pred_check_branch
        %1644 = sbr.rel (%p1642) target = $region60
      $region59: #{deep_made_forward.1} parent=55 // pred_region
        %s1645 = smul.u32 64, %s19
        %p1646 = scmp.lt.s32.totalorder %s1645, 127
        %s1647 = scalar_select %p1646, %s1645, 127
        %s1648 = smul.addr %s1647, 8
        %s1649 = scalar_lea.vmem %s7, %s1648
      $region60: #{deep_made_forward.1} parent=55 // pred_fallthru
        _
    $region56: #{deep_made_forward.1} parent=5 // pred_fallthru
      _
  $region6: #{deep_made_forward.1} parent=0 // loop_footer
    %s17 = sadd.s32 1, %s13
  $region7: #{deep_made_forward.1} parent=0 // loop_footer_branch
    %12 = sbr.rel target = $region3
  $region8: #{deep_made_forward.1} parent=0 // loop_exit
    _

</llo_original>
